<compile_context>
chip_gen: v5e
topology: v5e:2x2
jax: 0.10.0
libtpu: 0.0.40
codegen_flags: <defaults>
</compile_context>

<pallas_src>
import functools
import math

import jax
import jax.numpy as jnp
from jax.experimental import pallas as pl
from jax.experimental.pallas import tpu as pltpu

NUM_HEADS = 4
LN_EPS = 1e-5


def _layernorm_fm(xT, w_col, b_col):
    """Feature-major LayerNorm: xT [C, L], normalize over channels (axis 0)."""
    mu = jnp.mean(xT, axis=0, keepdims=True)             # [1, L]
    xc = xT - mu
    var = jnp.mean(xc * xc, axis=0, keepdims=True)       # [1, L]
    inv = jax.lax.rsqrt(var + LN_EPS)
    return xc * inv * w_col + b_col                      # [C, L]


def _gelu_exact(x):
    # PyTorch nn.GELU() default = exact erf formulation.
    return 0.5 * x * (1.0 + jax.lax.erf(x * (1.0 / math.sqrt(2.0))))


def _self_attention_kernel(x_ref, wpk_ref, vpk_ref, out_ref, *, C, S, b_blk):
    H = NUM_HEADS
    Dh = C // H

    xT = x_ref[...]                                      # [C, Lb] feature-major, lane-dense

    # ---- unpack parameters (static sublane slices of the two packed refs) ----
    wqkv = wpk_ref[0:3 * C, :]                           # [3C, C] (q rows pre-scaled)
    wo = wpk_ref[3 * C:4 * C, :]
    w1 = wpk_ref[4 * C:5 * C, :]
    w2 = wpk_ref[5 * C:6 * C, :]
    ln_w = vpk_ref[0:C, :]
    ln_b = vpk_ref[C:2 * C, :]
    bqkv = vpk_ref[2 * C:5 * C, :]
    bo = vpk_ref[5 * C:6 * C, :]
    ln2_w = vpk_ref[6 * C:7 * C, :]
    ln2_b = vpk_ref[7 * C:8 * C, :]
    b1 = vpk_ref[8 * C:9 * C, :]
    b2 = vpk_ref[9 * C:10 * C, :]

    # ---- LayerNorm (pre-attention) + fused QKV projection on the full slab ----
    xT_ln = _layernorm_fm(xT, ln_w, ln_b)
    qkvT = jnp.dot(wqkv, xT_ln, preferred_element_type=jnp.float32) + bqkv   # [3C, Lb]

    # ---- multi-head attention, one batch element at a time (static unroll) ----
    attn_cols = []
    for b in range(b_blk):
        sl = qkvT[:, b * S:(b + 1) * S]                  # [3C, S] static lane slice
        qh = sl[0:C].reshape(H, Dh, S)                   # sublane regroup (Dh = 8)
        kh = sl[C:2 * C].reshape(H, Dh, S)
        vh = sl[2 * C:3 * C].reshape(H, Dh, S)

        s_hqk = jnp.einsum('hdq,hdk->hqk', qh, kh,
                           preferred_element_type=jnp.float32)    # [H, S, S]
        m = jnp.max(s_hqk, axis=-1, keepdims=True)
        p = jnp.exp(s_hqk - m)
        denom = jnp.sum(p, axis=-1)                      # [H, S]

        o = jnp.einsum('hdk,hqk->hdq', vh, p,
                       preferred_element_type=jnp.float32)        # [H, Dh, S]
        # Deferred softmax normalization: scale the small PV output, not p.
        o = o * pl.reciprocal(denom, approx=True)[:, None, :]
        attn_cols.append(o.reshape(C, S))
    attnT = attn_cols[0] if b_blk == 1 else jnp.concatenate(attn_cols, axis=1)  # [C, Lb]

    # ---- output projection + residual 1 ----
    attnT = jnp.dot(wo, attnT, preferred_element_type=jnp.float32) + bo + xT

    # ---- feed-forward: LayerNorm -> Linear -> GELU -> Linear, + residual 2 ----
    ffT = _layernorm_fm(attnT, ln2_w, ln2_b)
    ffT = jnp.dot(w1, ffT, preferred_element_type=jnp.float32) + b1
    ffT = _gelu_exact(ffT)
    ffT = jnp.dot(w2, ffT, preferred_element_type=jnp.float32) + b2

    out_ref[...] = (ffT + attnT).astype(out_ref.dtype)


def pack_params(params):
    """Pack the 12 PyTorch-layout parameter arrays into 2 arrays.

    Also folds 1/sqrt(Dh) into the Q rows of the in_proj weight/bias so the
    kernel never touches the attention scale.
    """
    (ln_w, ln_b, wqkv, bqkv, wo, bo, ln2_w, ln2_b, w1, b1, w2, b2) = params
    C = wo.shape[0]
    Dh = C // NUM_HEADS
    scale = 1.0 / math.sqrt(Dh)
    wqkv_s = wqkv.at[:C].multiply(scale)
    bqkv_s = bqkv.at[:C].multiply(scale)
    w_pack = jnp.concatenate([wqkv_s, wo, w1, w2], axis=0)                 # [6C, C]
    v_pack = jnp.concatenate([ln_w, ln_b, bqkv_s, bo, ln2_w, ln2_b, b1, b2],
                             axis=0)                                       # [10C, 1]
    return w_pack, v_pack


def _pick_batch_block(B, S):
    """Batches per grid block: make the lane width >= 128 when S < 128."""
    if S >= 128:
        b_blk = 1
    else:
        b_blk = min(B, max(1, 128 // S))
        while B % b_blk != 0:
            b_blk -= 1
    # BlockSpec lane dim must be a multiple of 128 or the full array extent.
    if (B // b_blk) > 1 and (b_blk * S) % 128 != 0:
        b_blk = B
    return b_blk


def self_attention_pallas(x_nchw, params):
    """x_nchw: [B, C, H, W] float32.  Returns [B, C, H, W]."""
    B, C, H, W = x_nchw.shape
    S = H * W
    assert C % NUM_HEADS == 0

    w_pack, v_pack = pack_params(params)

    # Feature-major, lane-dense slab: lane index = b * S + s.
    x_fm = jnp.transpose(x_nchw.reshape(B, C, S), (1, 0, 2)).reshape(C, B * S)

    b_blk = _pick_batch_block(B, S)
    n_blk = B // b_blk
    L_blk = b_blk * S

    kernel = functools.partial(_self_attention_kernel, C=C, S=S, b_blk=b_blk)

    out = pl.pallas_call(
        kernel,
        out_shape=jax.ShapeDtypeStruct((C, B * S), x_fm.dtype),
        grid_spec=pltpu.PrefetchScalarGridSpec(
            num_scalar_prefetch=0,
            grid=(n_blk,),
            in_specs=[
                pl.BlockSpec((C, L_blk), lambda i: (0, i)),        # activations
                pl.BlockSpec((6 * C, C), lambda i: (0, 0)),        # packed weights
                pl.BlockSpec((10 * C, 1), lambda i: (0, 0)),       # packed bias/LN cols
            ],
            out_specs=pl.BlockSpec((C, L_blk), lambda i: (0, i)),
        ),
        compiler_params=pltpu.CompilerParams(
            dimension_semantics=("parallel",) if n_blk > 1 else ("arbitrary",)),
    )(x_fm, w_pack, v_pack)

    return jnp.transpose(out.reshape(C, B, S), (1, 0, 2)).reshape(B, C, H, W)


def make_params(key, C):
    """Deterministic synthetic parameters matching the PyTorch module shapes.

    Weights keep PyTorch's [out, in] layout; biases / LayerNorm params are
    stored as [*, 1] columns.
    """
    ks = jax.random.split(key, 8)
    s = 0.05
    ln_w = jnp.ones((C, 1), jnp.float32)
    ln_b = jnp.zeros((C, 1), jnp.float32)
    wqkv = s * jax.random.normal(ks[0], (3 * C, C), jnp.float32)   # mha.in_proj_weight
    bqkv = s * jax.random.normal(ks[1], (3 * C, 1), jnp.float32)   # mha.in_proj_bias
    wo = s * jax.random.normal(ks[2], (C, C), jnp.float32)         # mha.out_proj.weight
    bo = s * jax.random.normal(ks[3], (C, 1), jnp.float32)         # mha.out_proj.bias
    ln2_w = jnp.ones((C, 1), jnp.float32)
    ln2_b = jnp.zeros((C, 1), jnp.float32)
    w1 = s * jax.random.normal(ks[4], (C, C), jnp.float32)
    b1 = s * jax.random.normal(ks[5], (C, 1), jnp.float32)
    w2 = s * jax.random.normal(ks[6], (C, C), jnp.float32)
    b2 = s * jax.random.normal(ks[7], (C, 1), jnp.float32)
    return (ln_w, ln_b, wqkv, bqkv, wo, bo, ln2_w, ln2_b, w1, b1, w2, b2)


def self_attention_ref(x_nchw, params):
    """Pure-JAX reference mirroring the PyTorch forward (token-major)."""
    (ln_w, ln_b, wqkv, bqkv, wo, bo, ln2_w, ln2_b, w1, b1, w2, b2) = params
    B, C, H, W = x_nchw.shape
    S = H * W
    Dh = C // NUM_HEADS
    x = jnp.transpose(x_nchw.reshape(B, C, S), (0, 2, 1))          # [B, S, C]

    def ln(v, w, b):
        mu = jnp.mean(v, axis=-1, keepdims=True)
        var = jnp.mean((v - mu) ** 2, axis=-1, keepdims=True)
        return (v - mu) / jnp.sqrt(var + LN_EPS) * w.reshape(1, 1, -1) + b.reshape(1, 1, -1)

    x_ln = ln(x, ln_w, ln_b)
    qkv = jnp.einsum('bsc,dc->bsd', x_ln, wqkv) + bqkv.reshape(1, 1, -1)
    q, k, v = qkv[..., :C], qkv[..., C:2 * C], qkv[..., 2 * C:]
    q = q.reshape(B, S, NUM_HEADS, Dh).transpose(0, 2, 1, 3)
    k = k.reshape(B, S, NUM_HEADS, Dh).transpose(0, 2, 1, 3)
    v = v.reshape(B, S, NUM_HEADS, Dh).transpose(0, 2, 1, 3)
    scores = jnp.einsum('bhqd,bhkd->bhqk', q, k) / math.sqrt(Dh)
    p = jax.nn.softmax(scores, axis=-1)
    attn = jnp.einsum('bhqk,bhkd->bhqd', p, v).transpose(0, 2, 1, 3).reshape(B, S, C)
    attn = jnp.einsum('bsc,dc->bsd', attn, wo) + bo.reshape(1, 1, -1)
    attn = attn + x
    ff = ln(attn, ln2_w, ln2_b)
    ff = jnp.einsum('bsc,dc->bsd', ff, w1) + b1.reshape(1, 1, -1)
    ff = jax.nn.gelu(ff, approximate=False)
    ff = jnp.einsum('bsc,dc->bsd', ff, w2) + b2.reshape(1, 1, -1)
    out = ff + attn
    return jnp.transpose(out, (0, 2, 1)).reshape(B, C, H, W)


if __name__ == "__main__":
    B, C, H, W = 2, 32, 8, 8   # channels divisible by 4 heads (Dh = 8 = one sublane group)
    key = jax.random.PRNGKey(0)
    kx, kp = jax.random.split(key)
    x = jax.random.normal(kx, (B, C, H, W), jnp.float32)
    params = make_params(kp, C)

    out = jax.block_until_ready(self_attention_pallas(x, params))
    ref = jax.block_until_ready(self_attention_ref(x, params))

    assert out.shape == (B, C, H, W)
    err = jnp.max(jnp.abs(out - ref))
    # f32 matmuls; slack only for the approx softmax reciprocal.
    assert jnp.allclose(out, ref, atol=2e-3, rtol=2e-3), f"max abs err {err}"
    print("KERNEL_OK")
</pallas_src>

<mosaic_0001>
module attributes {stable_mosaic.version = 11 : i64} {
  func.func @_self_attention_kernel(%arg0: i32, %arg1: memref<32x128xf32, #tpu.memory_space<vmem>>, %arg2: memref<192x32xf32, #tpu.memory_space<vmem>>, %arg3: memref<320x1xf32, #tpu.memory_space<vmem>>, %arg4: memref<32x128xf32, #tpu.memory_space<vmem>>) attributes {dimension_semantics = [#tpu.dimension_semantics<arbitrary>], iteration_bounds = array<i64: 1>, scalar_prefetch = 0 : i64, scratch_operands = 0 : i64, tpu.core_type = #tpu.core_type<tc>, window_params = [{transform_indices = @transform_0, window_bounds = array<i64: 32, 128>}, {pipeline_mode = #tpu.pipeline_mode<synchronous>, transform_indices = @transform_1, window_bounds = array<i64: 192, 32>}, {pipeline_mode = #tpu.pipeline_mode<synchronous>, transform_indices = @transform_2, window_bounds = array<i64: 320, 1>}, {transform_indices = @transform_3, window_bounds = array<i64: 32, 128>}]} {
    %c0 = arith.constant 0 : index
    %c0_0 = arith.constant 0 : index
    %0 = vector.load %arg1[%c0, %c0_0] : memref<32x128xf32, #tpu.memory_space<vmem>>, vector<32x128xf32>
    %c0_1 = arith.constant 0 : index
    %c0_2 = arith.constant 0 : index
    %1 = vector.load %arg2[%c0_1, %c0_2] : memref<192x32xf32, #tpu.memory_space<vmem>>, vector<96x32xf32>
    %c96 = arith.constant 96 : index
    %c0_3 = arith.constant 0 : index
    %2 = vector.load %arg2[%c96, %c0_3] : memref<192x32xf32, #tpu.memory_space<vmem>>, vector<32x32xf32>
    %c128 = arith.constant 128 : index
    %c0_4 = arith.constant 0 : index
    %3 = vector.load %arg2[%c128, %c0_4] : memref<192x32xf32, #tpu.memory_space<vmem>>, vector<32x32xf32>
    %c160 = arith.constant 160 : index
    %c0_5 = arith.constant 0 : index
    %4 = vector.load %arg2[%c160, %c0_5] : memref<192x32xf32, #tpu.memory_space<vmem>>, vector<32x32xf32>
    %c0_6 = arith.constant 0 : index
    %c0_7 = arith.constant 0 : index
    %5 = vector.load %arg3[%c0_6, %c0_7] : memref<320x1xf32, #tpu.memory_space<vmem>>, vector<32x1xf32>
    %c32 = arith.constant 32 : index
    %c0_8 = arith.constant 0 : index
    %6 = vector.load %arg3[%c32, %c0_8] : memref<320x1xf32, #tpu.memory_space<vmem>>, vector<32x1xf32>
    %c64 = arith.constant 64 : index
    %c0_9 = arith.constant 0 : index
    %7 = vector.load %arg3[%c64, %c0_9] : memref<320x1xf32, #tpu.memory_space<vmem>>, vector<96x1xf32>
    %c160_10 = arith.constant 160 : index
    %c0_11 = arith.constant 0 : index
    %8 = vector.load %arg3[%c160_10, %c0_11] : memref<320x1xf32, #tpu.memory_space<vmem>>, vector<32x1xf32>
    %c192 = arith.constant 192 : index
    %c0_12 = arith.constant 0 : index
    %9 = vector.load %arg3[%c192, %c0_12] : memref<320x1xf32, #tpu.memory_space<vmem>>, vector<32x1xf32>
    %c224 = arith.constant 224 : index
    %c0_13 = arith.constant 0 : index
    %10 = vector.load %arg3[%c224, %c0_13] : memref<320x1xf32, #tpu.memory_space<vmem>>, vector<32x1xf32>
    %c256 = arith.constant 256 : index
    %c0_14 = arith.constant 0 : index
    %11 = vector.load %arg3[%c256, %c0_14] : memref<320x1xf32, #tpu.memory_space<vmem>>, vector<32x1xf32>
    %c288 = arith.constant 288 : index
    %c0_15 = arith.constant 0 : index
    %12 = vector.load %arg3[%c288, %c0_15] : memref<320x1xf32, #tpu.memory_space<vmem>>, vector<32x1xf32>
    %cst = arith.constant dense<0.000000e+00> : vector<128xf32>
    %13 = vector.multi_reduction <add>, %0, %cst [0] : vector<32x128xf32> to vector<128xf32>
    %14 = vector.shape_cast %13 : vector<128xf32> to vector<1x128xf32>
    %cst_16 = arith.constant 3.200000e+01 : f32
    %15 = vector.broadcast %cst_16 : f32 to vector<1x128xf32>
    %16 = arith.divf %14, %15 : vector<1x128xf32>
    %17 = vector.broadcast %16 : vector<1x128xf32> to vector<32x128xf32>
    %18 = arith.subf %0, %17 : vector<32x128xf32>
    %19 = arith.mulf %18, %18 : vector<32x128xf32>
    %cst_17 = arith.constant dense<0.000000e+00> : vector<128xf32>
    %20 = vector.multi_reduction <add>, %19, %cst_17 [0] : vector<32x128xf32> to vector<128xf32>
    %21 = vector.shape_cast %20 : vector<128xf32> to vector<1x128xf32>
    %cst_18 = arith.constant 3.200000e+01 : f32
    %22 = vector.broadcast %cst_18 : f32 to vector<1x128xf32>
    %23 = arith.divf %21, %22 : vector<1x128xf32>
    %cst_19 = arith.constant 9.99999974E-6 : f32
    %24 = vector.broadcast %cst_19 : f32 to vector<1x128xf32>
    %25 = arith.addf %23, %24 : vector<1x128xf32>
    %26 = math.rsqrt %25 : vector<1x128xf32>
    %27 = vector.broadcast %26 : vector<1x128xf32> to vector<32x128xf32>
    %28 = arith.mulf %18, %27 : vector<32x128xf32>
    %29 = vector.broadcast %5 : vector<32x1xf32> to vector<32x128xf32>
    %30 = arith.mulf %28, %29 : vector<32x128xf32>
    %31 = vector.broadcast %6 : vector<32x1xf32> to vector<32x128xf32>
    %32 = arith.addf %30, %31 : vector<32x128xf32>
    %cst_20 = arith.constant dense<0.000000e+00> : vector<96x128xf32>
    %33 = tpu.matmul %1, %32, %cst_20 {dimension_numbers = #tpu.dot_dimension_numbers<[1], [0], [0], [1], [0, 0, 1, 1], [], []>} : vector<96x32xf32>, vector<32x128xf32>, vector<96x128xf32> -> vector<96x128xf32>
    %34 = vector.broadcast %7 : vector<96x1xf32> to vector<96x128xf32>
    %35 = arith.addf %33, %34 : vector<96x128xf32>
    %36 = vector.extract_strided_slice %35 {offsets = [0, 0], sizes = [96, 64], strides = [1, 1]} : vector<96x128xf32> to vector<96x64xf32>
    %37 = vector.extract_strided_slice %36 {offsets = [0, 0], sizes = [32, 64], strides = [1, 1]} : vector<96x64xf32> to vector<32x64xf32>
    %38 = vector.shape_cast %37 : vector<32x64xf32> to vector<4x8x64xf32>
    %39 = vector.extract_strided_slice %36 {offsets = [32, 0], sizes = [32, 64], strides = [1, 1]} : vector<96x64xf32> to vector<32x64xf32>
    %40 = vector.shape_cast %39 : vector<32x64xf32> to vector<4x8x64xf32>
    %41 = vector.extract_strided_slice %36 {offsets = [64, 0], sizes = [32, 64], strides = [1, 1]} : vector<96x64xf32> to vector<32x64xf32>
    %42 = vector.shape_cast %41 : vector<32x64xf32> to vector<4x8x64xf32>
    "tpu.trace_start"() <{level = 10 : i32, message = "hdq,hdk->hqk"}> : () -> ()
    %cst_21 = arith.constant dense<0.000000e+00> : vector<4x64x64xf32>
    %43 = tpu.matmul %38, %40, %cst_21 {dimension_numbers = #tpu.dot_dimension_numbers<[1], [1], [2], [2], [0, 0, 0, 2, 1, 2], [0], [0]>} : vector<4x8x64xf32>, vector<4x8x64xf32>, vector<4x64x64xf32> -> vector<4x64x64xf32>
    "tpu.trace_stop"() : () -> ()
    %cst_22 = arith.constant dense<0xFF800000> : vector<4x64xf32>
    %44 = vector.multi_reduction <maximumf>, %43, %cst_22 [2] : vector<4x64x64xf32> to vector<4x64xf32>
    %45 = vector.shape_cast %44 : vector<4x64xf32> to vector<4x64x1xf32>
    %46 = vector.broadcast %45 : vector<4x64x1xf32> to vector<4x64x64xf32>
    %47 = arith.subf %43, %46 : vector<4x64x64xf32>
    %48 = math.exp %47 : vector<4x64x64xf32>
    %cst_23 = arith.constant dense<0.000000e+00> : vector<4x64xf32>
    %49 = vector.multi_reduction <add>, %48, %cst_23 [2] : vector<4x64x64xf32> to vector<4x64xf32>
    "tpu.trace_start"() <{level = 10 : i32, message = "hdk,hqk->hdq"}> : () -> ()
    %cst_24 = arith.constant dense<0.000000e+00> : vector<4x8x64xf32>
    %50 = tpu.matmul %42, %48, %cst_24 {dimension_numbers = #tpu.dot_dimension_numbers<[2], [2], [1], [1], [0, 0, 0, 1, 1, 1], [0], [0]>} : vector<4x8x64xf32>, vector<4x64x64xf32>, vector<4x8x64xf32> -> vector<4x8x64xf32>
    "tpu.trace_stop"() : () -> ()
    %51 = tpu.reciprocal %49 {approx = true} : vector<4x64xf32> -> vector<4x64xf32>
    %52 = vector.shape_cast %51 : vector<4x64xf32> to vector<4x1x64xf32>
    %53 = vector.broadcast %52 : vector<4x1x64xf32> to vector<4x8x64xf32>
    %54 = arith.mulf %50, %53 : vector<4x8x64xf32>
    %55 = vector.shape_cast %54 : vector<4x8x64xf32> to vector<32x64xf32>
    %56 = vector.extract_strided_slice %35 {offsets = [0, 64], sizes = [96, 64], strides = [1, 1]} : vector<96x128xf32> to vector<96x64xf32>
    %57 = vector.extract_strided_slice %56 {offsets = [0, 0], sizes = [32, 64], strides = [1, 1]} : vector<96x64xf32> to vector<32x64xf32>
    %58 = vector.shape_cast %57 : vector<32x64xf32> to vector<4x8x64xf32>
    %59 = vector.extract_strided_slice %56 {offsets = [32, 0], sizes = [32, 64], strides = [1, 1]} : vector<96x64xf32> to vector<32x64xf32>
    %60 = vector.shape_cast %59 : vector<32x64xf32> to vector<4x8x64xf32>
    %61 = vector.extract_strided_slice %56 {offsets = [64, 0], sizes = [32, 64], strides = [1, 1]} : vector<96x64xf32> to vector<32x64xf32>
    %62 = vector.shape_cast %61 : vector<32x64xf32> to vector<4x8x64xf32>
    "tpu.trace_start"() <{level = 10 : i32, message = "hdq,hdk->hqk"}> : () -> ()
    %cst_25 = arith.constant dense<0.000000e+00> : vector<4x64x64xf32>
    %63 = tpu.matmul %58, %60, %cst_25 {dimension_numbers = #tpu.dot_dimension_numbers<[1], [1], [2], [2], [0, 0, 0, 2, 1, 2], [0], [0]>} : vector<4x8x64xf32>, vector<4x8x64xf32>, vector<4x64x64xf32> -> vector<4x64x64xf32>
    "tpu.trace_stop"() : () -> ()
    %cst_26 = arith.constant dense<0xFF800000> : vector<4x64xf32>
    %64 = vector.multi_reduction <maximumf>, %63, %cst_26 [2] : vector<4x64x64xf32> to vector<4x64xf32>
    %65 = vector.shape_cast %64 : vector<4x64xf32> to vector<4x64x1xf32>
    %66 = vector.broadcast %65 : vector<4x64x1xf32> to vector<4x64x64xf32>
    %67 = arith.subf %63, %66 : vector<4x64x64xf32>
    %68 = math.exp %67 : vector<4x64x64xf32>
    %cst_27 = arith.constant dense<0.000000e+00> : vector<4x64xf32>
    %69 = vector.multi_reduction <add>, %68, %cst_27 [2] : vector<4x64x64xf32> to vector<4x64xf32>
    "tpu.trace_start"() <{level = 10 : i32, message = "hdk,hqk->hdq"}> : () -> ()
    %cst_28 = arith.constant dense<0.000000e+00> : vector<4x8x64xf32>
    %70 = tpu.matmul %62, %68, %cst_28 {dimension_numbers = #tpu.dot_dimension_numbers<[2], [2], [1], [1], [0, 0, 0, 1, 1, 1], [0], [0]>} : vector<4x8x64xf32>, vector<4x64x64xf32>, vector<4x8x64xf32> -> vector<4x8x64xf32>
    "tpu.trace_stop"() : () -> ()
    %71 = tpu.reciprocal %69 {approx = true} : vector<4x64xf32> -> vector<4x64xf32>
    %72 = vector.shape_cast %71 : vector<4x64xf32> to vector<4x1x64xf32>
    %73 = vector.broadcast %72 : vector<4x1x64xf32> to vector<4x8x64xf32>
    %74 = arith.mulf %70, %73 : vector<4x8x64xf32>
    %75 = vector.shape_cast %74 : vector<4x8x64xf32> to vector<32x64xf32>
    %76 = tpu.concatenate %55, %75 in 1 : vector<32x64xf32>, vector<32x64xf32> -> vector<32x128xf32>
    %cst_29 = arith.constant dense<0.000000e+00> : vector<32x128xf32>
    %77 = tpu.matmul %2, %76, %cst_29 {dimension_numbers = #tpu.dot_dimension_numbers<[1], [0], [0], [1], [0, 0, 1, 1], [], []>} : vector<32x32xf32>, vector<32x128xf32>, vector<32x128xf32> -> vector<32x128xf32>
    %78 = vector.broadcast %8 : vector<32x1xf32> to vector<32x128xf32>
    %79 = arith.addf %77, %78 : vector<32x128xf32>
    %80 = arith.addf %79, %0 : vector<32x128xf32>
    %cst_30 = arith.constant dense<0.000000e+00> : vector<128xf32>
    %81 = vector.multi_reduction <add>, %80, %cst_30 [0] : vector<32x128xf32> to vector<128xf32>
    %82 = vector.shape_cast %81 : vector<128xf32> to vector<1x128xf32>
    %cst_31 = arith.constant 3.200000e+01 : f32
    %83 = vector.broadcast %cst_31 : f32 to vector<1x128xf32>
    %84 = arith.divf %82, %83 : vector<1x128xf32>
    %85 = vector.broadcast %84 : vector<1x128xf32> to vector<32x128xf32>
    %86 = arith.subf %80, %85 : vector<32x128xf32>
    %87 = arith.mulf %86, %86 : vector<32x128xf32>
    %cst_32 = arith.constant dense<0.000000e+00> : vector<128xf32>
    %88 = vector.multi_reduction <add>, %87, %cst_32 [0] : vector<32x128xf32> to vector<128xf32>
    %89 = vector.shape_cast %88 : vector<128xf32> to vector<1x128xf32>
    %cst_33 = arith.constant 3.200000e+01 : f32
    %90 = vector.broadcast %cst_33 : f32 to vector<1x128xf32>
    %91 = arith.divf %89, %90 : vector<1x128xf32>
    %cst_34 = arith.constant 9.99999974E-6 : f32
    %92 = vector.broadcast %cst_34 : f32 to vector<1x128xf32>
    %93 = arith.addf %91, %92 : vector<1x128xf32>
    %94 = math.rsqrt %93 : vector<1x128xf32>
    %95 = vector.broadcast %94 : vector<1x128xf32> to vector<32x128xf32>
    %96 = arith.mulf %86, %95 : vector<32x128xf32>
    %97 = vector.broadcast %9 : vector<32x1xf32> to vector<32x128xf32>
    %98 = arith.mulf %96, %97 : vector<32x128xf32>
    %99 = vector.broadcast %10 : vector<32x1xf32> to vector<32x128xf32>
    %100 = arith.addf %98, %99 : vector<32x128xf32>
    %cst_35 = arith.constant dense<0.000000e+00> : vector<32x128xf32>
    %101 = tpu.matmul %3, %100, %cst_35 {dimension_numbers = #tpu.dot_dimension_numbers<[1], [0], [0], [1], [0, 0, 1, 1], [], []>} : vector<32x32xf32>, vector<32x128xf32>, vector<32x128xf32> -> vector<32x128xf32>
    %102 = vector.broadcast %11 : vector<32x1xf32> to vector<32x128xf32>
    %103 = arith.addf %101, %102 : vector<32x128xf32>
    %cst_36 = arith.constant 5.000000e-01 : f32
    %104 = vector.broadcast %cst_36 : f32 to vector<32x128xf32>
    %105 = arith.mulf %104, %103 : vector<32x128xf32>
    %cst_37 = arith.constant 0.707106769 : f32
    %106 = vector.broadcast %cst_37 : f32 to vector<32x128xf32>
    %107 = arith.mulf %103, %106 : vector<32x128xf32>
    %108 = math.erf %107 : vector<32x128xf32>
    %cst_38 = arith.constant 1.000000e+00 : f32
    %109 = vector.broadcast %cst_38 : f32 to vector<32x128xf32>
    %110 = arith.addf %109, %108 : vector<32x128xf32>
    %111 = arith.mulf %105, %110 : vector<32x128xf32>
    %cst_39 = arith.constant dense<0.000000e+00> : vector<32x128xf32>
    %112 = tpu.matmul %4, %111, %cst_39 {dimension_numbers = #tpu.dot_dimension_numbers<[1], [0], [0], [1], [0, 0, 1, 1], [], []>} : vector<32x32xf32>, vector<32x128xf32>, vector<32x128xf32> -> vector<32x128xf32>
    %113 = vector.broadcast %12 : vector<32x1xf32> to vector<32x128xf32>
    %114 = arith.addf %112, %113 : vector<32x128xf32>
    %115 = arith.addf %114, %80 : vector<32x128xf32>
    %c0_40 = arith.constant 0 : index
    %c0_41 = arith.constant 0 : index
    %116 = vector.load %arg4[%c0_40, %c0_41] : memref<32x128xf32, #tpu.memory_space<vmem>>, vector<32x128xf32>
    tpu.vector_store %arg4[%c0_40, %c0_41], %115 {strides = array<i32>} : memref<32x128xf32, #tpu.memory_space<vmem>>, vector<32x128xf32>,
    return
  }
  func.func @transform_0(%arg0: i32) -> (i32, i32) {
    %c0_i32 = arith.constant 0 : i32
    %c0_i32_0 = arith.constant 0 : i32
    return %c0_i32, %arg0 : i32, i32
  }
  func.func @transform_1(%arg0: i32) -> (i32, i32) {
    %c0_i32 = arith.constant 0 : i32
    %c0_i32_0 = arith.constant 0 : i32
    %c0_i32_1 = arith.constant 0 : i32
    return %c0_i32, %c0_i32_0 : i32, i32
  }
  func.func @transform_2(%arg0: i32) -> (i32, i32) {
    %c0_i32 = arith.constant 0 : i32
    %c0_i32_0 = arith.constant 0 : i32
    %c0_i32_1 = arith.constant 0 : i32
    return %c0_i32, %c0_i32_0 : i32, i32
  }
  func.func @transform_3(%arg0: i32) -> (i32, i32) {
    %c0_i32 = arith.constant 0 : i32
    %c0_i32_0 = arith.constant 0 : i32
    return %c0_i32, %arg0 : i32, i32
  }
}

</mosaic_0001>

<llo_original>
// kernel: tpu_custom_call.1
$region0: #{tpu_custom_call.1}
  #allocation0 [shape = 'u32[]', space=smem, size = 0x4, offset = 0x4, fixed_abs, tag = 'smem constant byte address 0x4 - core index']
  #allocation1 [shape = 'u32[72,128]{1,0:T(1,128)}', space=vmem, size = 0x9000, scoped, tag = 'internal scratch']
  %s0 = inlined_call_operand.vmem [shape: f32[32,128], index: 0, kind: input, shape index: {}]
  %s1 = inlined_call_operand.vmem [shape: f32[192,32], index: 1, kind: input, shape index: {}]
  %s2 = inlined_call_operand.vmem [shape: f32[320,1], index: 2, kind: input, shape index: {}]
  %s3 = inlined_call_operand.hbm [shape: f32[32,128], index: 3, kind: output, shape index: {}]
  %s4 = sld [smem:[#allocation0]]
  $region22: #{tpu_custom_call.1} parent=0
    _
  %s6 = ssub.s32 1, %s4
  %s7 = scalar_select 0, %s6, %s4
  $region1: #{tpu_custom_call.1} parent=0
    #allocation2 [shape = 'u8[16384]{0}', space=vmem, size = 0x4000, scoped, tag = 'output window, operand 0, single buffered']
    #allocation3 [shape = 's32[1]{0}', space=sflag, size = 0x4, scoped, tag = 'scoped memory for tpu_custom_call.1']
    %8 = vsyncpa [#allocation3], 0
    // Predicated region
    $region2: #{tpu_custom_call.1} parent=1 // pred_check
      _
    $region3: #{tpu_custom_call.1} parent=1 // pred_check_branch
      %10 = sbr.rel (0) target = $region5
    $region4: #{tpu_custom_call.1} parent=1 // pred_region
      _
    $region5: #{tpu_custom_call.1} parent=1 // pred_fallthru
      _
    // Predicated region
    $region6: #{tpu_custom_call.1} parent=1 // pred_check
      _
    $region7: #{tpu_custom_call.1} parent=1 // pred_check_branch
      %12 = sbr.rel (0) target = $region9
    $region8: #{tpu_custom_call.1} parent=1 // pred_region
      _
    $region9: #{tpu_custom_call.1} parent=1 // pred_fallthru
      _
    // Predicated region
    $region10: #{tpu_custom_call.1} parent=1 // pred_check
      _
    $region11: #{tpu_custom_call.1} parent=1 // pred_check_branch
      %14 = sbr.rel (0) target = $region13
    $region12: #{tpu_custom_call.1} parent=1 // pred_region
      _
    $region13: #{tpu_custom_call.1} parent=1 // pred_fallthru
      _
    %v15 = vld [vmem:[%s0] sm:$0xff]
    %v16 = vld [vmem:[%s0 + $0x8] sm:$0xff]
    %v17 = vld [vmem:[%s0 + $0x10] sm:$0xff]
    %v18 = vld [vmem:[%s0 + $0x18] sm:$0xff]
    %v19 = vld [vmem:[%s1] sm:$0xff]
    %v20 = vld [vmem:[%s1 + $0x8] sm:$0xff]
    %v21 = vld [vmem:[%s1 + $0x10] sm:$0xff]
    %v22 = vld [vmem:[%s1 + $0x18] sm:$0xff]
    %v23 = vld [vmem:[%s1 + $0x20] sm:$0xff]
    %v24 = vld [vmem:[%s1 + $0x28] sm:$0xff]
    %v25 = vld [vmem:[%s1 + $0x30] sm:$0xff]
    %v26 = vld [vmem:[%s1 + $0x38] sm:$0xff]
    %v27 = vld [vmem:[%s1 + $0x40] sm:$0xff]
    %v28 = vld [vmem:[%s1 + $0x48] sm:$0xff]
    %v29 = vld [vmem:[%s1 + $0x50] sm:$0xff]
    %v30 = vld [vmem:[%s1 + $0x58] sm:$0xff]
    %v31 = vld [vmem:[%s1 + $0x60] sm:$0xff]
    %v32 = vld [vmem:[%s1 + $0x68] sm:$0xff]
    %v33 = vld [vmem:[%s1 + $0x70] sm:$0xff]
    %v34 = vld [vmem:[%s1 + $0x78] sm:$0xff]
    %v35 = vld [vmem:[%s1 + $0x80] sm:$0xff]
    %v36 = vld [vmem:[%s1 + $0x88] sm:$0xff]
    %v37 = vld [vmem:[%s1 + $0x90] sm:$0xff]
    %v38 = vld [vmem:[%s1 + $0x98] sm:$0xff]
    %v39 = vld [vmem:[%s1 + $0xa0] sm:$0xff]
    %v40 = vld [vmem:[%s1 + $0xa8] sm:$0xff]
    %v41 = vld [vmem:[%s1 + $0xb0] sm:$0xff]
    %v42 = vld [vmem:[%s1 + $0xb8] sm:$0xff]
    %v43 = vld [vmem:[%s2] sm:$0xff]
    %v44 = vld [vmem:[%s2 + $0x8] sm:$0xff]
    %v45 = vld [vmem:[%s2 + $0x10] sm:$0xff]
    %v46 = vld [vmem:[%s2 + $0x18] sm:$0xff]
    %v47 = vld [vmem:[%s2 + $0x20] sm:$0xff]
    %v48 = vld [vmem:[%s2 + $0x28] sm:$0xff]
    %v49 = vld [vmem:[%s2 + $0x30] sm:$0xff]
    %v50 = vld [vmem:[%s2 + $0x38] sm:$0xff]
    %v51 = vld [vmem:[%s2 + $0x40] sm:$0xff]
    %v52 = vld [vmem:[%s2 + $0x48] sm:$0xff]
    %v53 = vld [vmem:[%s2 + $0x50] sm:$0xff]
    %v54 = vld [vmem:[%s2 + $0x58] sm:$0xff]
    %v55 = vld [vmem:[%s2 + $0x60] sm:$0xff]
    %v56 = vld [vmem:[%s2 + $0x68] sm:$0xff]
    %v57 = vld [vmem:[%s2 + $0x70] sm:$0xff]
    %v58 = vld [vmem:[%s2 + $0x78] sm:$0xff]
    %v59 = vld [vmem:[%s2 + $0x80] sm:$0xff]
    %v60 = vld [vmem:[%s2 + $0x88] sm:$0xff]
    %v61 = vld [vmem:[%s2 + $0x90] sm:$0xff]
    %v62 = vld [vmem:[%s2 + $0x98] sm:$0xff]
    %v63 = vld [vmem:[%s2 + $0xa0] sm:$0xff]
    %v64 = vld [vmem:[%s2 + $0xa8] sm:$0xff]
    %v65 = vld [vmem:[%s2 + $0xb0] sm:$0xff]
    %v66 = vld [vmem:[%s2 + $0xb8] sm:$0xff]
    %v67 = vld [vmem:[%s2 + $0xc0] sm:$0xff]
    %v68 = vld [vmem:[%s2 + $0xc8] sm:$0xff]
    %v69 = vld [vmem:[%s2 + $0xd0] sm:$0xff]
    %v70 = vld [vmem:[%s2 + $0xd8] sm:$0xff]
    %v71 = vld [vmem:[%s2 + $0xe0] sm:$0xff]
    %v72 = vld [vmem:[%s2 + $0xe8] sm:$0xff]
    %v73 = vld [vmem:[%s2 + $0xf0] sm:$0xff]
    %v74 = vld [vmem:[%s2 + $0xf8] sm:$0xff]
    %v75 = vld [vmem:[%s2 + $0x100] sm:$0xff]
    %v76 = vld [vmem:[%s2 + $0x108] sm:$0xff]
    %v77 = vld [vmem:[%s2 + $0x110] sm:$0xff]
    %v78 = vld [vmem:[%s2 + $0x118] sm:$0xff]
    %v79 = vld [vmem:[%s2 + $0x120] sm:$0xff]
    %v80 = vld [vmem:[%s2 + $0x128] sm:$0xff]
    %v81 = vld [vmem:[%s2 + $0x130] sm:$0xff]
    %v82 = vld [vmem:[%s2 + $0x138] sm:$0xff]
    %v83 = vadd.f32 %v15, %v16
    %v84 = vadd.f32 %v83, %v17
    %v85 = vadd.f32 %v84, %v18
    %v86 = vrot.slane %v85, 4
    %v87 = vadd.f32 %v85, %v86
    %v88 = vrot.slane %v87, 2
    %v89 = vadd.f32 %v87, %v88
    %v90 = vrot.slane %v89, 1
    %v91 = vadd.f32 %v89, %v90
    %v92 = vrcp.pop 32.0
    %v93 = vmul.f32 32.0, %v92
    %v94 = vsub.f32 1.0, %v93
    %v95 = vmul.f32 %v92, %v94
    %v96 = vadd.f32 %v92, %v95
    %vm97 = vweird.f32 %v92
    %v98 = vsel %vm97, %v92, %v96
    %v99 = vmul.f32 %v91, %v98
    %v100 = vsub.f32 %v15, %v99
    %v101 = vsub.f32 %v16, %v99
    %v102 = vsub.f32 %v17, %v99
    %v103 = vsub.f32 %v18, %v99
    %v104 = vmul.f32 %v100, %v100
    %v105 = vmul.f32 %v101, %v101
    %v106 = vmul.f32 %v102, %v102
    %v107 = vmul.f32 %v103, %v103
    %v108 = vadd.f32 %v104, %v105
    %v109 = vadd.f32 %v108, %v106
    %v110 = vadd.f32 %v109, %v107
    %v111 = vrot.slane %v110, 4
    %v112 = vadd.f32 %v110, %v111
    %v113 = vrot.slane %v112, 2
    %v114 = vadd.f32 %v112, %v113
    %v115 = vrot.slane %v114, 1
    %v116 = vadd.f32 %v114, %v115
    %v117 = vmul.f32 %v116, %v98
    %v118 = vadd.f32 %v117, 1e-05
    %v119 = vrsqrt.pop %v118
    %v120 = vmul.f32 %v119, %v118
    %v121 = vmul.f32 %v120, %v119
    %v122 = vmul.f32 0.5, %v121
    %v123 = vsub.f32 1.5, %v122
    %v124 = vmul.f32 %v119, %v123
    %vm125 = vweird.f32 %v118
    %vm126 = vweird.f32 %v119
    %vm127 = vmor %vm125, %vm126
    %v128 = vsel %vm127, %v119, %v124
    %v129 = vmul.f32 %v100, %v128
    %v130 = vmul.f32 %v101, %v128
    %v131 = vmul.f32 %v102, %v128
    %v132 = vmul.f32 %v103, %v128
    %134 = vset.pattern.permute.xlu0 0
    %135 = vperm.xlu0 %134, %v43
    %v136 = vpop.permute.xlu0 %135
    %139 = vset.pattern.permute.xlu0 0
    %140 = vperm.xlu0 %139, %v44
    %v141 = vpop.permute.xlu0 %140
    %144 = vset.pattern.permute.xlu0 0
    %145 = vperm.xlu0 %144, %v45
    %v146 = vpop.permute.xlu0 %145
    %149 = vset.pattern.permute.xlu0 0
    %150 = vperm.xlu0 %149, %v46
    %v151 = vpop.permute.xlu0 %150
    %v153 = vmul.f32 %v129, %v136
    %v154 = vmul.f32 %v130, %v141
    %v155 = vmul.f32 %v131, %v146
    %v156 = vmul.f32 %v132, %v151
    %158 = vset.pattern.permute.xlu0 0
    %159 = vperm.xlu0 %158, %v47
    %v160 = vpop.permute.xlu0 %159
    %163 = vset.pattern.permute.xlu0 0
    %164 = vperm.xlu0 %163, %v48
    %v165 = vpop.permute.xlu0 %164
    %168 = vset.pattern.permute.xlu0 0
    %169 = vperm.xlu0 %168, %v49
    %v170 = vpop.permute.xlu0 %169
    %173 = vset.pattern.permute.xlu0 0
    %174 = vperm.xlu0 %173, %v50
    %v175 = vpop.permute.xlu0 %174
    %v177 = vadd.f32 %v153, %v160
    %v178 = vadd.f32 %v154, %v165
    %v179 = vadd.f32 %v155, %v170
    %v180 = vadd.f32 %v156, %v175
    %182 = vset.pattern.permute.xlu0 0
    %183 = vperm.xlu0 %182, %v51
    %v184 = vpop.permute.xlu0 %183
    %187 = vset.pattern.permute.xlu0 0
    %188 = vperm.xlu0 %187, %v52
    %v189 = vpop.permute.xlu0 %188
    %192 = vset.pattern.permute.xlu0 0
    %193 = vperm.xlu0 %192, %v53
    %v194 = vpop.permute.xlu0 %193
    %197 = vset.pattern.permute.xlu0 0
    %198 = vperm.xlu0 %197, %v54
    %v199 = vpop.permute.xlu0 %198
    %202 = vset.pattern.permute.xlu0 0
    %203 = vperm.xlu0 %202, %v55
    %v204 = vpop.permute.xlu0 %203
    %207 = vset.pattern.permute.xlu0 0
    %208 = vperm.xlu0 %207, %v56
    %v209 = vpop.permute.xlu0 %208
    %212 = vset.pattern.permute.xlu0 0
    %213 = vperm.xlu0 %212, %v57
    %v214 = vpop.permute.xlu0 %213
    %217 = vset.pattern.permute.xlu0 0
    %218 = vperm.xlu0 %217, %v58
    %v219 = vpop.permute.xlu0 %218
    %222 = vset.pattern.permute.xlu0 0
    %223 = vperm.xlu0 %222, %v59
    %v224 = vpop.permute.xlu0 %223
    %227 = vset.pattern.permute.xlu0 0
    %228 = vperm.xlu0 %227, %v60
    %v229 = vpop.permute.xlu0 %228
    %232 = vset.pattern.permute.xlu0 0
    %233 = vperm.xlu0 %232, %v61
    %v234 = vpop.permute.xlu0 %233
    %237 = vset.pattern.permute.xlu0 0
    %238 = vperm.xlu0 %237, %v62
    %v239 = vpop.permute.xlu0 %238
    %vm241 = vcmask 261120
    %v243 = vsel %vm241, %v19, 0
    %v246 = vsel %vm241, %v20, 0
    %v249 = vsel %vm241, %v21, 0
    %v252 = vsel %vm241, %v22, 0
    %v255 = vsel %vm241, %v23, 0
    %v258 = vsel %vm241, %v24, 0
    %v261 = vsel %vm241, %v25, 0
    %v264 = vsel %vm241, %v26, 0
    %v267 = vsel %vm241, %v27, 0
    %v270 = vsel %vm241, %v28, 0
    %v273 = vsel %vm241, %v29, 0
    %v276 = vsel %vm241, %v30, 0
    %278 = vmatpush.msra.mxu0 0.0
    %279 = vmatpush.msra.mxu0 0.0
    %280 = vmatpush.msra.mxu0 0.0
    %281 = vmatpush.msra.mxu0 0.0
    %282 = vmatpush.msra.mxu0 0.0
    %283 = vmatpush.msra.mxu0 0.0
    %284 = vmatpush.msra.mxu0 0.0
    %285 = vmatpush.msra.mxu0 0.0
    %286 = vmatpush.msra.mxu0 0.0
    %287 = vmatpush.msra.mxu0 0.0
    %288 = vmatpush.msra.mxu0 0.0
    %289 = vmatpush.msra.mxu0 0.0
    %290 = vmatpush.msra.mxu0 %v180
    %291 = vmatpush.msra.mxu0 %v179
    %292 = vmatpush.msra.mxu0 %v178
    %293 = vmatpush.msra.mxu0 %v177
    %294 = vmatmul.f32.gmra.mxu0 %v243
    %v295 = vpop.f32.mrf.mxu0
    %v296 = vadd.f32 %v184, %v295
    %297 = vmatmul.f32.gmra.mxu0 %v246
    %v298 = vpop.f32.mrf.mxu0
    %v299 = vadd.f32 %v189, %v298
    %300 = vmatmul.f32.gmra.mxu0 %v249
    %v301 = vpop.f32.mrf.mxu0
    %v302 = vadd.f32 %v194, %v301
    %303 = vmatmul.f32.gmra.mxu0 %v252
    %v304 = vpop.f32.mrf.mxu0
    %v305 = vadd.f32 %v199, %v304
    %306 = vmatmul.f32.gmra.mxu0 %v255
    %v307 = vpop.f32.mrf.mxu0
    %v308 = vadd.f32 %v204, %v307
    %309 = vmatmul.f32.gmra.mxu0 %v258
    %v310 = vpop.f32.mrf.mxu0
    %v311 = vadd.f32 %v209, %v310
    %312 = vmatmul.f32.gmra.mxu0 %v261
    %v313 = vpop.f32.mrf.mxu0
    %v314 = vadd.f32 %v214, %v313
    %315 = vmatmul.f32.gmra.mxu0 %v264
    %v316 = vpop.f32.mrf.mxu0
    %v317 = vadd.f32 %v219, %v316
    %318 = vmatmul.f32.gmra.mxu0 %v267
    %v319 = vpop.f32.mrf.mxu0
    %v320 = vadd.f32 %v224, %v319
    %321 = vmatmul.f32.gmra.mxu0 %v270
    %v322 = vpop.f32.mrf.mxu0
    %v323 = vadd.f32 %v229, %v322
    %324 = vmatmul.f32.gmra.mxu0 %v273
    %v325 = vpop.f32.mrf.mxu0
    %v326 = vadd.f32 %v234, %v325
    %327 = vmatmul.f32.gmra.mxu0 %v276
    %v328 = vpop.f32.mrf.mxu0
    %v329 = vadd.f32 %v239, %v328
    %330 = vdwg.mxu0
    %331 = vxpose.xlu0.b32.start [1/16] %v296, 128
    %332 = vxpose.xlu0.b32.cont [2/16] 0.0, 128
    %333 = vxpose.xlu0.b32.cont [3/16] 0.0, 128
    %334 = vxpose.xlu0.b32.cont [4/16] 0.0, 128
    %335 = vxpose.xlu0.b32.cont [5/16] 0.0, 128
    %336 = vxpose.xlu0.b32.cont [6/16] 0.0, 128
    %337 = vxpose.xlu0.b32.cont [7/16] 0.0, 128
    %338 = vxpose.xlu0.b32.cont [8/16] 0.0, 128
    %339 = vxpose.xlu0.b32.cont [9/16] 0.0, 128
    %340 = vxpose.xlu0.b32.cont [10/16] 0.0, 128
    %341 = vxpose.xlu0.b32.cont [11/16] 0.0, 128
    %342 = vxpose.xlu0.b32.cont [12/16] 0.0, 128
    %343 = vxpose.xlu0.b32.cont [13/16] 0.0, 128
    %344 = vxpose.xlu0.b32.cont [14/16] 0.0, 128
    %345 = vxpose.xlu0.b32.cont [15/16] 0.0, 128
    %346 = vxpose.xlu0.b32.end [16/16] 0.0, 128
    %v347 = vpop.trf.xlu0
    %v348 = vpop.trf.xlu0
    %v349 = vpop.trf.xlu0
    %v350 = vpop.trf.xlu0
    %v351 = vpop.trf.xlu0
    %v352 = vpop.trf.xlu0
    %v353 = vpop.trf.xlu0
    %v354 = vpop.trf.xlu0
    %v355 = vpop.trf.xlu0
    %v356 = vpop.trf.xlu0
    %v357 = vpop.trf.xlu0
    %v358 = vpop.trf.xlu0
    %v359 = vpop.trf.xlu0
    %v360 = vpop.trf.xlu0
    %v361 = vpop.trf.xlu0
    %v362 = vpop.trf.xlu0
    %vm363 = vcmask 64512
    %v365 = vsel %vm363, %v347, 0
    %v368 = vsel %vm363, %v348, 0
    %v371 = vsel %vm363, %v349, 0
    %v374 = vsel %vm363, %v350, 0
    %v377 = vsel %vm363, %v351, 0
    %v380 = vsel %vm363, %v352, 0
    %v383 = vsel %vm363, %v353, 0
    %v386 = vsel %vm363, %v354, 0
    %388 = vmatpush.msra.mxu0 0.0
    %389 = vmatpush.msra.mxu0 0.0
    %390 = vmatpush.msra.mxu0 0.0
    %391 = vmatpush.msra.mxu0 0.0
    %392 = vmatpush.msra.mxu0 0.0
    %393 = vmatpush.msra.mxu0 0.0
    %394 = vmatpush.msra.mxu0 0.0
    %395 = vmatpush.msra.mxu0 0.0
    %396 = vmatpush.msra.mxu0 0.0
    %397 = vmatpush.msra.mxu0 0.0
    %398 = vmatpush.msra.mxu0 0.0
    %399 = vmatpush.msra.mxu0 0.0
    %400 = vmatpush.msra.mxu0 0.0
    %401 = vmatpush.msra.mxu0 0.0
    %402 = vmatpush.msra.mxu0 0.0
    %403 = vmatpush.msra.mxu0 %v308
    %404 = vmatmul.f32.gmra.mxu0 %v365
    %v405 = vpop.f32.mrf.mxu0
    %v406 = vadd.f32 0.0, %v405
    %407 = vmatmul.f32.gmra.mxu0 %v368
    %v408 = vpop.f32.mrf.mxu0
    %v409 = vadd.f32 0.0, %v408
    %410 = vmatmul.f32.gmra.mxu0 %v371
    %v411 = vpop.f32.mrf.mxu0
    %v412 = vadd.f32 0.0, %v411
    %413 = vmatmul.f32.gmra.mxu0 %v374
    %v414 = vpop.f32.mrf.mxu0
    %v415 = vadd.f32 0.0, %v414
    %416 = vmatmul.f32.gmra.mxu0 %v377
    %v417 = vpop.f32.mrf.mxu0
    %v418 = vadd.f32 0.0, %v417
    %419 = vmatmul.f32.gmra.mxu0 %v380
    %v420 = vpop.f32.mrf.mxu0
    %v421 = vadd.f32 0.0, %v420
    %422 = vmatmul.f32.gmra.mxu0 %v383
    %v423 = vpop.f32.mrf.mxu0
    %v424 = vadd.f32 0.0, %v423
    %425 = vmatmul.f32.gmra.mxu0 %v386
    %v426 = vpop.f32.mrf.mxu0
    %v427 = vadd.f32 0.0, %v426
    %428 = vdwg.mxu0
    %429 = vxpose.xlu0.b32.start [1/16] %v299, 128
    %430 = vxpose.xlu0.b32.cont [2/16] 0.0, 128
    %431 = vxpose.xlu0.b32.cont [3/16] 0.0, 128
    %432 = vxpose.xlu0.b32.cont [4/16] 0.0, 128
    %433 = vxpose.xlu0.b32.cont [5/16] 0.0, 128
    %434 = vxpose.xlu0.b32.cont [6/16] 0.0, 128
    %435 = vxpose.xlu0.b32.cont [7/16] 0.0, 128
    %436 = vxpose.xlu0.b32.cont [8/16] 0.0, 128
    %437 = vxpose.xlu0.b32.cont [9/16] 0.0, 128
    %438 = vxpose.xlu0.b32.cont [10/16] 0.0, 128
    %439 = vxpose.xlu0.b32.cont [11/16] 0.0, 128
    %440 = vxpose.xlu0.b32.cont [12/16] 0.0, 128
    %441 = vxpose.xlu0.b32.cont [13/16] 0.0, 128
    %442 = vxpose.xlu0.b32.cont [14/16] 0.0, 128
    %443 = vxpose.xlu0.b32.cont [15/16] 0.0, 128
    %444 = vxpose.xlu0.b32.end [16/16] 0.0, 128
    %v445 = vpop.trf.xlu0
    %v446 = vpop.trf.xlu0
    %v447 = vpop.trf.xlu0
    %v448 = vpop.trf.xlu0
    %v449 = vpop.trf.xlu0
    %v450 = vpop.trf.xlu0
    %v451 = vpop.trf.xlu0
    %v452 = vpop.trf.xlu0
    %v453 = vpop.trf.xlu0
    %v454 = vpop.trf.xlu0
    %v455 = vpop.trf.xlu0
    %v456 = vpop.trf.xlu0
    %v457 = vpop.trf.xlu0
    %v458 = vpop.trf.xlu0
    %v459 = vpop.trf.xlu0
    %v460 = vpop.trf.xlu0
    %v462 = vsel %vm363, %v445, 0
    %v465 = vsel %vm363, %v446, 0
    %v468 = vsel %vm363, %v447, 0
    %v471 = vsel %vm363, %v448, 0
    %v474 = vsel %vm363, %v449, 0
    %v477 = vsel %vm363, %v450, 0
    %v480 = vsel %vm363, %v451, 0
    %v483 = vsel %vm363, %v452, 0
    %485 = vmatpush.msra.mxu0 0.0
    %486 = vmatpush.msra.mxu0 0.0
    %487 = vmatpush.msra.mxu0 0.0
    %488 = vmatpush.msra.mxu0 0.0
    %489 = vmatpush.msra.mxu0 0.0
    %490 = vmatpush.msra.mxu0 0.0
    %491 = vmatpush.msra.mxu0 0.0
    %492 = vmatpush.msra.mxu0 0.0
    %493 = vmatpush.msra.mxu0 0.0
    %494 = vmatpush.msra.mxu0 0.0
    %495 = vmatpush.msra.mxu0 0.0
    %496 = vmatpush.msra.mxu0 0.0
    %497 = vmatpush.msra.mxu0 0.0
    %498 = vmatpush.msra.mxu0 0.0
    %499 = vmatpush.msra.mxu0 0.0
    %500 = vmatpush.msra.mxu0 %v311
    %501 = vmatmul.f32.gmra.mxu0 %v462
    %v502 = vpop.f32.mrf.mxu0
    %v503 = vadd.f32 0.0, %v502
    %504 = vmatmul.f32.gmra.mxu0 %v465
    %v505 = vpop.f32.mrf.mxu0
    %v506 = vadd.f32 0.0, %v505
    %507 = vmatmul.f32.gmra.mxu0 %v468
    %v508 = vpop.f32.mrf.mxu0
    %v509 = vadd.f32 0.0, %v508
    %510 = vmatmul.f32.gmra.mxu0 %v471
    %v511 = vpop.f32.mrf.mxu0
    %v512 = vadd.f32 0.0, %v511
    %513 = vmatmul.f32.gmra.mxu0 %v474
    %v514 = vpop.f32.mrf.mxu0
    %v515 = vadd.f32 0.0, %v514
    %516 = vmatmul.f32.gmra.mxu0 %v477
    %v517 = vpop.f32.mrf.mxu0
    %v518 = vadd.f32 0.0, %v517
    %519 = vmatmul.f32.gmra.mxu0 %v480
    %v520 = vpop.f32.mrf.mxu0
    %v521 = vadd.f32 0.0, %v520
    %522 = vmatmul.f32.gmra.mxu0 %v483
    %v523 = vpop.f32.mrf.mxu0
    %v524 = vadd.f32 0.0, %v523
    %525 = vdwg.mxu0
    %526 = vxpose.xlu0.b32.start [1/16] %v302, 128
    %527 = vxpose.xlu0.b32.cont [2/16] 0.0, 128
    %528 = vxpose.xlu0.b32.cont [3/16] 0.0, 128
    %529 = vxpose.xlu0.b32.cont [4/16] 0.0, 128
    %530 = vxpose.xlu0.b32.cont [5/16] 0.0, 128
    %531 = vxpose.xlu0.b32.cont [6/16] 0.0, 128
    %532 = vxpose.xlu0.b32.cont [7/16] 0.0, 128
    %533 = vxpose.xlu0.b32.cont [8/16] 0.0, 128
    %534 = vxpose.xlu0.b32.cont [9/16] 0.0, 128
    %535 = vxpose.xlu0.b32.cont [10/16] 0.0, 128
    %536 = vxpose.xlu0.b32.cont [11/16] 0.0, 128
    %537 = vxpose.xlu0.b32.cont [12/16] 0.0, 128
    %538 = vxpose.xlu0.b32.cont [13/16] 0.0, 128
    %539 = vxpose.xlu0.b32.cont [14/16] 0.0, 128
    %540 = vxpose.xlu0.b32.cont [15/16] 0.0, 128
    %541 = vxpose.xlu0.b32.end [16/16] 0.0, 128
    %v542 = vpop.trf.xlu0
    %v543 = vpop.trf.xlu0
    %v544 = vpop.trf.xlu0
    %v545 = vpop.trf.xlu0
    %v546 = vpop.trf.xlu0
    %v547 = vpop.trf.xlu0
    %v548 = vpop.trf.xlu0
    %v549 = vpop.trf.xlu0
    %v550 = vpop.trf.xlu0
    %v551 = vpop.trf.xlu0
    %v552 = vpop.trf.xlu0
    %v553 = vpop.trf.xlu0
    %v554 = vpop.trf.xlu0
    %v555 = vpop.trf.xlu0
    %v556 = vpop.trf.xlu0
    %v557 = vpop.trf.xlu0
    %v559 = vsel %vm363, %v542, 0
    %v562 = vsel %vm363, %v543, 0
    %v565 = vsel %vm363, %v544, 0
    %v568 = vsel %vm363, %v545, 0
    %v571 = vsel %vm363, %v546, 0
    %v574 = vsel %vm363, %v547, 0
    %v577 = vsel %vm363, %v548, 0
    %v580 = vsel %vm363, %v549, 0
    %582 = vmatpush.msra.mxu0 0.0
    %583 = vmatpush.msra.mxu0 0.0
    %584 = vmatpush.msra.mxu0 0.0
    %585 = vmatpush.msra.mxu0 0.0
    %586 = vmatpush.msra.mxu0 0.0
    %587 = vmatpush.msra.mxu0 0.0
    %588 = vmatpush.msra.mxu0 0.0
    %589 = vmatpush.msra.mxu0 0.0
    %590 = vmatpush.msra.mxu0 0.0
    %591 = vmatpush.msra.mxu0 0.0
    %592 = vmatpush.msra.mxu0 0.0
    %593 = vmatpush.msra.mxu0 0.0
    %594 = vmatpush.msra.mxu0 0.0
    %595 = vmatpush.msra.mxu0 0.0
    %596 = vmatpush.msra.mxu0 0.0
    %597 = vmatpush.msra.mxu0 %v314
    %598 = vmatmul.f32.gmra.mxu0 %v559
    %v599 = vpop.f32.mrf.mxu0
    %v600 = vadd.f32 0.0, %v599
    %601 = vmatmul.f32.gmra.mxu0 %v562
    %v602 = vpop.f32.mrf.mxu0
    %v603 = vadd.f32 0.0, %v602
    %604 = vmatmul.f32.gmra.mxu0 %v565
    %v605 = vpop.f32.mrf.mxu0
    %v606 = vadd.f32 0.0, %v605
    %607 = vmatmul.f32.gmra.mxu0 %v568
    %v608 = vpop.f32.mrf.mxu0
    %v609 = vadd.f32 0.0, %v608
    %610 = vmatmul.f32.gmra.mxu0 %v571
    %v611 = vpop.f32.mrf.mxu0
    %v612 = vadd.f32 0.0, %v611
    %613 = vmatmul.f32.gmra.mxu0 %v574
    %v614 = vpop.f32.mrf.mxu0
    %v615 = vadd.f32 0.0, %v614
    %616 = vmatmul.f32.gmra.mxu0 %v577
    %v617 = vpop.f32.mrf.mxu0
    %v618 = vadd.f32 0.0, %v617
    %619 = vmatmul.f32.gmra.mxu0 %v580
    %v620 = vpop.f32.mrf.mxu0
    %v621 = vadd.f32 0.0, %v620
    %622 = vdwg.mxu0
    %623 = vxpose.xlu0.b32.start [1/16] %v305, 128
    %624 = vxpose.xlu0.b32.cont [2/16] 0.0, 128
    %625 = vxpose.xlu0.b32.cont [3/16] 0.0, 128
    %626 = vxpose.xlu0.b32.cont [4/16] 0.0, 128
    %627 = vxpose.xlu0.b32.cont [5/16] 0.0, 128
    %628 = vxpose.xlu0.b32.cont [6/16] 0.0, 128
    %629 = vxpose.xlu0.b32.cont [7/16] 0.0, 128
    %630 = vxpose.xlu0.b32.cont [8/16] 0.0, 128
    %631 = vxpose.xlu0.b32.cont [9/16] 0.0, 128
    %632 = vxpose.xlu0.b32.cont [10/16] 0.0, 128
    %633 = vxpose.xlu0.b32.cont [11/16] 0.0, 128
    %634 = vxpose.xlu0.b32.cont [12/16] 0.0, 128
    %635 = vxpose.xlu0.b32.cont [13/16] 0.0, 128
    %636 = vxpose.xlu0.b32.cont [14/16] 0.0, 128
    %637 = vxpose.xlu0.b32.cont [15/16] 0.0, 128
    %638 = vxpose.xlu0.b32.end [16/16] 0.0, 128
    %v639 = vpop.trf.xlu0
    %v640 = vpop.trf.xlu0
    %v641 = vpop.trf.xlu0
    %v642 = vpop.trf.xlu0
    %v643 = vpop.trf.xlu0
    %v644 = vpop.trf.xlu0
    %v645 = vpop.trf.xlu0
    %v646 = vpop.trf.xlu0
    %v647 = vpop.trf.xlu0
    %v648 = vpop.trf.xlu0
    %v649 = vpop.trf.xlu0
    %v650 = vpop.trf.xlu0
    %v651 = vpop.trf.xlu0
    %v652 = vpop.trf.xlu0
    %v653 = vpop.trf.xlu0
    %v654 = vpop.trf.xlu0
    %v656 = vsel %vm363, %v639, 0
    %v659 = vsel %vm363, %v640, 0
    %v662 = vsel %vm363, %v641, 0
    %v665 = vsel %vm363, %v642, 0
    %v668 = vsel %vm363, %v643, 0
    %v671 = vsel %vm363, %v644, 0
    %v674 = vsel %vm363, %v645, 0
    %v677 = vsel %vm363, %v646, 0
    %679 = vmatpush.msra.mxu0 0.0
    %680 = vmatpush.msra.mxu0 0.0
    %681 = vmatpush.msra.mxu0 0.0
    %682 = vmatpush.msra.mxu0 0.0
    %683 = vmatpush.msra.mxu0 0.0
    %684 = vmatpush.msra.mxu0 0.0
    %685 = vmatpush.msra.mxu0 0.0
    %686 = vmatpush.msra.mxu0 0.0
    %687 = vmatpush.msra.mxu0 0.0
    %688 = vmatpush.msra.mxu0 0.0
    %689 = vmatpush.msra.mxu0 0.0
    %690 = vmatpush.msra.mxu0 0.0
    %691 = vmatpush.msra.mxu0 0.0
    %692 = vmatpush.msra.mxu0 0.0
    %693 = vmatpush.msra.mxu0 0.0
    %694 = vmatpush.msra.mxu0 %v317
    %695 = vmatmul.f32.gmra.mxu0 %v656
    %v696 = vpop.f32.mrf.mxu0
    %v697 = vadd.f32 0.0, %v696
    %698 = vmatmul.f32.gmra.mxu0 %v659
    %v699 = vpop.f32.mrf.mxu0
    %v700 = vadd.f32 0.0, %v699
    %701 = vmatmul.f32.gmra.mxu0 %v662
    %v702 = vpop.f32.mrf.mxu0
    %v703 = vadd.f32 0.0, %v702
    %704 = vmatmul.f32.gmra.mxu0 %v665
    %v705 = vpop.f32.mrf.mxu0
    %v706 = vadd.f32 0.0, %v705
    %707 = vmatmul.f32.gmra.mxu0 %v668
    %v708 = vpop.f32.mrf.mxu0
    %v709 = vadd.f32 0.0, %v708
    %710 = vmatmul.f32.gmra.mxu0 %v671
    %v711 = vpop.f32.mrf.mxu0
    %v712 = vadd.f32 0.0, %v711
    %713 = vmatmul.f32.gmra.mxu0 %v674
    %v714 = vpop.f32.mrf.mxu0
    %v715 = vadd.f32 0.0, %v714
    %716 = vmatmul.f32.gmra.mxu0 %v677
    %v717 = vpop.f32.mrf.mxu0
    %v718 = vadd.f32 0.0, %v717
    %719 = vdwg.mxu0
    %vm720 = vcmask 523264
    %v721 = vsel %vm720, %v406, -inf
    %722 = vmax.xlane.f32.xlu0 %v721
    %v723 = vpop.xlane.xlu0 %722
    %v724 = vsel %vm720, %v409, -inf
    %725 = vmax.xlane.f32.xlu0 %v724
    %v726 = vpop.xlane.xlu0 %725
    %v727 = vsel %vm720, %v412, -inf
    %728 = vmax.xlane.f32.xlu0 %v727
    %v729 = vpop.xlane.xlu0 %728
    %v730 = vsel %vm720, %v415, -inf
    %731 = vmax.xlane.f32.xlu0 %v730
    %v732 = vpop.xlane.xlu0 %731
    %v733 = vsel %vm720, %v418, -inf
    %734 = vmax.xlane.f32.xlu0 %v733
    %v735 = vpop.xlane.xlu0 %734
    %v736 = vsel %vm720, %v421, -inf
    %737 = vmax.xlane.f32.xlu0 %v736
    %v738 = vpop.xlane.xlu0 %737
    %v739 = vsel %vm720, %v424, -inf
    %740 = vmax.xlane.f32.xlu0 %v739
    %v741 = vpop.xlane.xlu0 %740
    %v742 = vsel %vm720, %v427, -inf
    %743 = vmax.xlane.f32.xlu0 %v742
    %v744 = vpop.xlane.xlu0 %743
    %v745 = vsel %vm720, %v503, -inf
    %746 = vmax.xlane.f32.xlu0 %v745
    %v747 = vpop.xlane.xlu0 %746
    %v748 = vsel %vm720, %v506, -inf
    %749 = vmax.xlane.f32.xlu0 %v748
    %v750 = vpop.xlane.xlu0 %749
    %v751 = vsel %vm720, %v509, -inf
    %752 = vmax.xlane.f32.xlu0 %v751
    %v753 = vpop.xlane.xlu0 %752
    %v754 = vsel %vm720, %v512, -inf
    %755 = vmax.xlane.f32.xlu0 %v754
    %v756 = vpop.xlane.xlu0 %755
    %v757 = vsel %vm720, %v515, -inf
    %758 = vmax.xlane.f32.xlu0 %v757
    %v759 = vpop.xlane.xlu0 %758
    %v760 = vsel %vm720, %v518, -inf
    %761 = vmax.xlane.f32.xlu0 %v760
    %v762 = vpop.xlane.xlu0 %761
    %v763 = vsel %vm720, %v521, -inf
    %764 = vmax.xlane.f32.xlu0 %v763
    %v765 = vpop.xlane.xlu0 %764
    %v766 = vsel %vm720, %v524, -inf
    %767 = vmax.xlane.f32.xlu0 %v766
    %v768 = vpop.xlane.xlu0 %767
    %v769 = vsel %vm720, %v600, -inf
    %770 = vmax.xlane.f32.xlu0 %v769
    %v771 = vpop.xlane.xlu0 %770
    %v772 = vsel %vm720, %v603, -inf
    %773 = vmax.xlane.f32.xlu0 %v772
    %v774 = vpop.xlane.xlu0 %773
    %v775 = vsel %vm720, %v606, -inf
    %776 = vmax.xlane.f32.xlu0 %v775
    %v777 = vpop.xlane.xlu0 %776
    %v778 = vsel %vm720, %v609, -inf
    %779 = vmax.xlane.f32.xlu0 %v778
    %v780 = vpop.xlane.xlu0 %779
    %v781 = vsel %vm720, %v612, -inf
    %782 = vmax.xlane.f32.xlu0 %v781
    %v783 = vpop.xlane.xlu0 %782
    %v784 = vsel %vm720, %v615, -inf
    %785 = vmax.xlane.f32.xlu0 %v784
    %v786 = vpop.xlane.xlu0 %785
    %v787 = vsel %vm720, %v618, -inf
    %788 = vmax.xlane.f32.xlu0 %v787
    %v789 = vpop.xlane.xlu0 %788
    %v790 = vsel %vm720, %v621, -inf
    %791 = vmax.xlane.f32.xlu0 %v790
    %v792 = vpop.xlane.xlu0 %791
    %v793 = vsel %vm720, %v697, -inf
    %794 = vmax.xlane.f32.xlu0 %v793
    %v795 = vpop.xlane.xlu0 %794
    %v796 = vsel %vm720, %v700, -inf
    %797 = vmax.xlane.f32.xlu0 %v796
    %v798 = vpop.xlane.xlu0 %797
    %v799 = vsel %vm720, %v703, -inf
    %800 = vmax.xlane.f32.xlu0 %v799
    %v801 = vpop.xlane.xlu0 %800
    %v802 = vsel %vm720, %v706, -inf
    %803 = vmax.xlane.f32.xlu0 %v802
    %v804 = vpop.xlane.xlu0 %803
    %v805 = vsel %vm720, %v709, -inf
    %806 = vmax.xlane.f32.xlu0 %v805
    %v807 = vpop.xlane.xlu0 %806
    %v808 = vsel %vm720, %v712, -inf
    %809 = vmax.xlane.f32.xlu0 %v808
    %v810 = vpop.xlane.xlu0 %809
    %v811 = vsel %vm720, %v715, -inf
    %812 = vmax.xlane.f32.xlu0 %v811
    %v813 = vpop.xlane.xlu0 %812
    %v814 = vsel %vm720, %v718, -inf
    %815 = vmax.xlane.f32.xlu0 %v814
    %v816 = vpop.xlane.xlu0 %815
    %v817 = vsub.f32 %v406, %v723
    %v818 = vsub.f32 %v409, %v726
    %v819 = vsub.f32 %v412, %v729
    %v820 = vsub.f32 %v415, %v732
    %v821 = vsub.f32 %v418, %v735
    %v822 = vsub.f32 %v421, %v738
    %v823 = vsub.f32 %v424, %v741
    %v824 = vsub.f32 %v427, %v744
    %v825 = vsub.f32 %v503, %v747
    %v826 = vsub.f32 %v506, %v750
    %v827 = vsub.f32 %v509, %v753
    %v828 = vsub.f32 %v512, %v756
    %v829 = vsub.f32 %v515, %v759
    %v830 = vsub.f32 %v518, %v762
    %v831 = vsub.f32 %v521, %v765
    %v832 = vsub.f32 %v524, %v768
    %v833 = vsub.f32 %v600, %v771
    %v834 = vsub.f32 %v603, %v774
    %v835 = vsub.f32 %v606, %v777
    %v836 = vsub.f32 %v609, %v780
    %v837 = vsub.f32 %v612, %v783
    %v838 = vsub.f32 %v615, %v786
    %v839 = vsub.f32 %v618, %v789
    %v840 = vsub.f32 %v621, %v792
    %v841 = vsub.f32 %v697, %v795
    %v842 = vsub.f32 %v700, %v798
    %v843 = vsub.f32 %v703, %v801
    %v844 = vsub.f32 %v706, %v804
    %v845 = vsub.f32 %v709, %v807
    %v846 = vsub.f32 %v712, %v810
    %v847 = vsub.f32 %v715, %v813
    %v848 = vsub.f32 %v718, %v816
    %v849 = vmul.f32 %v817, 1.442695
    %v850 = vpow.pop %v849
    %v851 = vmul.f32 %v818, 1.442695
    %v852 = vpow.pop %v851
    %v853 = vmul.f32 %v819, 1.442695
    %v854 = vpow.pop %v853
    %v855 = vmul.f32 %v820, 1.442695
    %v856 = vpow.pop %v855
    %v857 = vmul.f32 %v821, 1.442695
    %v858 = vpow.pop %v857
    %v859 = vmul.f32 %v822, 1.442695
    %v860 = vpow.pop %v859
    %v861 = vmul.f32 %v823, 1.442695
    %v862 = vpow.pop %v861
    %v863 = vmul.f32 %v824, 1.442695
    %v864 = vpow.pop %v863
    %v865 = vmul.f32 %v825, 1.442695
    %v866 = vpow.pop %v865
    %v867 = vmul.f32 %v826, 1.442695
    %v868 = vpow.pop %v867
    %v869 = vmul.f32 %v827, 1.442695
    %v870 = vpow.pop %v869
    %v871 = vmul.f32 %v828, 1.442695
    %v872 = vpow.pop %v871
    %v873 = vmul.f32 %v829, 1.442695
    %v874 = vpow.pop %v873
    %v875 = vmul.f32 %v830, 1.442695
    %v876 = vpow.pop %v875
    %v877 = vmul.f32 %v831, 1.442695
    %v878 = vpow.pop %v877
    %v879 = vmul.f32 %v832, 1.442695
    %v880 = vpow.pop %v879
    %v881 = vmul.f32 %v833, 1.442695
    %v882 = vpow.pop %v881
    %v883 = vmul.f32 %v834, 1.442695
    %v884 = vpow.pop %v883
    %v885 = vmul.f32 %v835, 1.442695
    %v886 = vpow.pop %v885
    %v887 = vmul.f32 %v836, 1.442695
    %v888 = vpow.pop %v887
    %v889 = vmul.f32 %v837, 1.442695
    %v890 = vpow.pop %v889
    %v891 = vmul.f32 %v838, 1.442695
    %v892 = vpow.pop %v891
    %v893 = vmul.f32 %v839, 1.442695
    %v894 = vpow.pop %v893
    %v895 = vmul.f32 %v840, 1.442695
    %v896 = vpow.pop %v895
    %v897 = vmul.f32 %v841, 1.442695
    %v898 = vpow.pop %v897
    %v899 = vmul.f32 %v842, 1.442695
    %v900 = vpow.pop %v899
    %v901 = vmul.f32 %v843, 1.442695
    %v902 = vpow.pop %v901
    %v903 = vmul.f32 %v844, 1.442695
    %v904 = vpow.pop %v903
    %v905 = vmul.f32 %v845, 1.442695
    %v906 = vpow.pop %v905
    %v907 = vmul.f32 %v846, 1.442695
    %v908 = vpow.pop %v907
    %v909 = vmul.f32 %v847, 1.442695
    %v910 = vpow.pop %v909
    %v911 = vmul.f32 %v848, 1.442695
    %v912 = vpow.pop %v911
    %v913 = vsel %vm720, %v850, 0.0
    %914 = vadd.xlane.f32.xlu0 %v913
    %v915 = vpop.xlane.xlu0 %914
    %v916 = vsel %vm720, %v852, 0.0
    %917 = vadd.xlane.f32.xlu0 %v916
    %v918 = vpop.xlane.xlu0 %917
    %v919 = vsel %vm720, %v854, 0.0
    %920 = vadd.xlane.f32.xlu0 %v919
    %v921 = vpop.xlane.xlu0 %920
    %v922 = vsel %vm720, %v856, 0.0
    %923 = vadd.xlane.f32.xlu0 %v922
    %v924 = vpop.xlane.xlu0 %923
    %v925 = vsel %vm720, %v858, 0.0
    %926 = vadd.xlane.f32.xlu0 %v925
    %v927 = vpop.xlane.xlu0 %926
    %v928 = vsel %vm720, %v860, 0.0
    %929 = vadd.xlane.f32.xlu0 %v928
    %v930 = vpop.xlane.xlu0 %929
    %v931 = vsel %vm720, %v862, 0.0
    %932 = vadd.xlane.f32.xlu0 %v931
    %v933 = vpop.xlane.xlu0 %932
    %v934 = vsel %vm720, %v864, 0.0
    %935 = vadd.xlane.f32.xlu0 %v934
    %v936 = vpop.xlane.xlu0 %935
    %v937 = vsel %vm720, %v866, 0.0
    %938 = vadd.xlane.f32.xlu0 %v937
    %v939 = vpop.xlane.xlu0 %938
    %v940 = vsel %vm720, %v868, 0.0
    %941 = vadd.xlane.f32.xlu0 %v940
    %v942 = vpop.xlane.xlu0 %941
    %v943 = vsel %vm720, %v870, 0.0
    %944 = vadd.xlane.f32.xlu0 %v943
    %v945 = vpop.xlane.xlu0 %944
    %v946 = vsel %vm720, %v872, 0.0
    %947 = vadd.xlane.f32.xlu0 %v946
    %v948 = vpop.xlane.xlu0 %947
    %v949 = vsel %vm720, %v874, 0.0
    %950 = vadd.xlane.f32.xlu0 %v949
    %v951 = vpop.xlane.xlu0 %950
    %v952 = vsel %vm720, %v876, 0.0
    %953 = vadd.xlane.f32.xlu0 %v952
    %v954 = vpop.xlane.xlu0 %953
    %v955 = vsel %vm720, %v878, 0.0
    %956 = vadd.xlane.f32.xlu0 %v955
    %v957 = vpop.xlane.xlu0 %956
    %v958 = vsel %vm720, %v880, 0.0
    %959 = vadd.xlane.f32.xlu0 %v958
    %v960 = vpop.xlane.xlu0 %959
    %v961 = vsel %vm720, %v882, 0.0
    %962 = vadd.xlane.f32.xlu0 %v961
    %v963 = vpop.xlane.xlu0 %962
    %v964 = vsel %vm720, %v884, 0.0
    %965 = vadd.xlane.f32.xlu0 %v964
    %v966 = vpop.xlane.xlu0 %965
    %v967 = vsel %vm720, %v886, 0.0
    %968 = vadd.xlane.f32.xlu0 %v967
    %v969 = vpop.xlane.xlu0 %968
    %v970 = vsel %vm720, %v888, 0.0
    %971 = vadd.xlane.f32.xlu0 %v970
    %v972 = vpop.xlane.xlu0 %971
    %v973 = vsel %vm720, %v890, 0.0
    %974 = vadd.xlane.f32.xlu0 %v973
    %v975 = vpop.xlane.xlu0 %974
    %v976 = vsel %vm720, %v892, 0.0
    %977 = vadd.xlane.f32.xlu0 %v976
    %v978 = vpop.xlane.xlu0 %977
    %v979 = vsel %vm720, %v894, 0.0
    %980 = vadd.xlane.f32.xlu0 %v979
    %v981 = vpop.xlane.xlu0 %980
    %v982 = vsel %vm720, %v896, 0.0
    %983 = vadd.xlane.f32.xlu0 %v982
    %v984 = vpop.xlane.xlu0 %983
    %v985 = vsel %vm720, %v898, 0.0
    %986 = vadd.xlane.f32.xlu0 %v985
    %v987 = vpop.xlane.xlu0 %986
    %v988 = vsel %vm720, %v900, 0.0
    %989 = vadd.xlane.f32.xlu0 %v988
    %v990 = vpop.xlane.xlu0 %989
    %v991 = vsel %vm720, %v902, 0.0
    %992 = vadd.xlane.f32.xlu0 %v991
    %v993 = vpop.xlane.xlu0 %992
    %v994 = vsel %vm720, %v904, 0.0
    %995 = vadd.xlane.f32.xlu0 %v994
    %v996 = vpop.xlane.xlu0 %995
    %v997 = vsel %vm720, %v906, 0.0
    %998 = vadd.xlane.f32.xlu0 %v997
    %v999 = vpop.xlane.xlu0 %998
    %v1000 = vsel %vm720, %v908, 0.0
    %1001 = vadd.xlane.f32.xlu0 %v1000
    %v1002 = vpop.xlane.xlu0 %1001
    %v1003 = vsel %vm720, %v910, 0.0
    %1004 = vadd.xlane.f32.xlu0 %v1003
    %v1005 = vpop.xlane.xlu0 %1004
    %v1006 = vsel %vm720, %v912, 0.0
    %1007 = vadd.xlane.f32.xlu0 %v1006
    %v1008 = vpop.xlane.xlu0 %1007
    %v1010 = vsel %vm720, %v320, 0
    %v1013 = vsel %vm720, %v850, 0
    %v1016 = vsel %vm720, %v852, 0
    %v1019 = vsel %vm720, %v854, 0
    %v1022 = vsel %vm720, %v856, 0
    %v1025 = vsel %vm720, %v858, 0
    %v1028 = vsel %vm720, %v860, 0
    %v1031 = vsel %vm720, %v862, 0
    %v1034 = vsel %vm720, %v864, 0
    %1036 = vmatpush.xpose.msra.mxu0 0.0
    %1037 = vmatpush.xpose.msra.mxu0 0.0
    %1038 = vmatpush.xpose.msra.mxu0 0.0
    %1039 = vmatpush.xpose.msra.mxu0 0.0
    %1040 = vmatpush.xpose.msra.mxu0 0.0
    %1041 = vmatpush.xpose.msra.mxu0 0.0
    %1042 = vmatpush.xpose.msra.mxu0 0.0
    %1043 = vmatpush.xpose.msra.mxu0 0.0
    %1044 = vmatpush.xpose.msra.mxu0 %v1034
    %1045 = vmatpush.xpose.msra.mxu0 %v1031
    %1046 = vmatpush.xpose.msra.mxu0 %v1028
    %1047 = vmatpush.xpose.msra.mxu0 %v1025
    %1048 = vmatpush.xpose.msra.mxu0 %v1022
    %1049 = vmatpush.xpose.msra.mxu0 %v1019
    %1050 = vmatpush.xpose.msra.mxu0 %v1016
    %1051 = vmatpush.xpose.msra.mxu0 %v1013
    %1052 = vmatmul.f32.gmra.mxu0 %v1010
    %v1053 = vpop.f32.mrf.mxu0
    %v1054 = vadd.f32 0.0, %v1053
    %1055 = vdwg.mxu0
    %v1057 = vsel %vm720, %v323, 0
    %v1060 = vsel %vm720, %v866, 0
    %v1063 = vsel %vm720, %v868, 0
    %v1066 = vsel %vm720, %v870, 0
    %v1069 = vsel %vm720, %v872, 0
    %v1072 = vsel %vm720, %v874, 0
    %v1075 = vsel %vm720, %v876, 0
    %v1078 = vsel %vm720, %v878, 0
    %v1081 = vsel %vm720, %v880, 0
    %1083 = vmatpush.xpose.msra.mxu0 0.0
    %1084 = vmatpush.xpose.msra.mxu0 0.0
    %1085 = vmatpush.xpose.msra.mxu0 0.0
    %1086 = vmatpush.xpose.msra.mxu0 0.0
    %1087 = vmatpush.xpose.msra.mxu0 0.0
    %1088 = vmatpush.xpose.msra.mxu0 0.0
    %1089 = vmatpush.xpose.msra.mxu0 0.0
    %1090 = vmatpush.xpose.msra.mxu0 0.0
    %1091 = vmatpush.xpose.msra.mxu0 %v1081
    %1092 = vmatpush.xpose.msra.mxu0 %v1078
    %1093 = vmatpush.xpose.msra.mxu0 %v1075
    %1094 = vmatpush.xpose.msra.mxu0 %v1072
    %1095 = vmatpush.xpose.msra.mxu0 %v1069
    %1096 = vmatpush.xpose.msra.mxu0 %v1066
    %1097 = vmatpush.xpose.msra.mxu0 %v1063
    %1098 = vmatpush.xpose.msra.mxu0 %v1060
    %1099 = vmatmul.f32.gmra.mxu0 %v1057
    %v1100 = vpop.f32.mrf.mxu0
    %v1101 = vadd.f32 0.0, %v1100
    %1102 = vdwg.mxu0
    %v1104 = vsel %vm720, %v326, 0
    %v1107 = vsel %vm720, %v882, 0
    %v1110 = vsel %vm720, %v884, 0
    %v1113 = vsel %vm720, %v886, 0
    %v1116 = vsel %vm720, %v888, 0
    %v1119 = vsel %vm720, %v890, 0
    %v1122 = vsel %vm720, %v892, 0
    %v1125 = vsel %vm720, %v894, 0
    %v1128 = vsel %vm720, %v896, 0
    %1130 = vmatpush.xpose.msra.mxu0 0.0
    %1131 = vmatpush.xpose.msra.mxu0 0.0
    %1132 = vmatpush.xpose.msra.mxu0 0.0
    %1133 = vmatpush.xpose.msra.mxu0 0.0
    %1134 = vmatpush.xpose.msra.mxu0 0.0
    %1135 = vmatpush.xpose.msra.mxu0 0.0
    %1136 = vmatpush.xpose.msra.mxu0 0.0
    %1137 = vmatpush.xpose.msra.mxu0 0.0
    %1138 = vmatpush.xpose.msra.mxu0 %v1128
    %1139 = vmatpush.xpose.msra.mxu0 %v1125
    %1140 = vmatpush.xpose.msra.mxu0 %v1122
    %1141 = vmatpush.xpose.msra.mxu0 %v1119
    %1142 = vmatpush.xpose.msra.mxu0 %v1116
    %1143 = vmatpush.xpose.msra.mxu0 %v1113
    %1144 = vmatpush.xpose.msra.mxu0 %v1110
    %1145 = vmatpush.xpose.msra.mxu0 %v1107
    %1146 = vmatmul.f32.gmra.mxu0 %v1104
    %v1147 = vpop.f32.mrf.mxu0
    %v1148 = vadd.f32 0.0, %v1147
    %1149 = vdwg.mxu0
    %v1151 = vsel %vm720, %v329, 0
    %v1154 = vsel %vm720, %v898, 0
    %v1157 = vsel %vm720, %v900, 0
    %v1160 = vsel %vm720, %v902, 0
    %v1163 = vsel %vm720, %v904, 0
    %v1166 = vsel %vm720, %v906, 0
    %v1169 = vsel %vm720, %v908, 0
    %v1172 = vsel %vm720, %v910, 0
    %v1175 = vsel %vm720, %v912, 0
    %1177 = vmatpush.xpose.msra.mxu0 0.0
    %1178 = vmatpush.xpose.msra.mxu0 0.0
    %1179 = vmatpush.xpose.msra.mxu0 0.0
    %1180 = vmatpush.xpose.msra.mxu0 0.0
    %1181 = vmatpush.xpose.msra.mxu0 0.0
    %1182 = vmatpush.xpose.msra.mxu0 0.0
    %1183 = vmatpush.xpose.msra.mxu0 0.0
    %1184 = vmatpush.xpose.msra.mxu0 0.0
    %1185 = vmatpush.xpose.msra.mxu0 %v1175
    %1186 = vmatpush.xpose.msra.mxu0 %v1172
    %1187 = vmatpush.xpose.msra.mxu0 %v1169
    %1188 = vmatpush.xpose.msra.mxu0 %v1166
    %1189 = vmatpush.xpose.msra.mxu0 %v1163
    %1190 = vmatpush.xpose.msra.mxu0 %v1160
    %1191 = vmatpush.xpose.msra.mxu0 %v1157
    %1192 = vmatpush.xpose.msra.mxu0 %v1154
    %1193 = vmatmul.f32.gmra.mxu0 %v1151
    %v1194 = vpop.f32.mrf.mxu0
    %v1195 = vadd.f32 0.0, %v1194
    %1196 = vdwg.mxu0
    %v1197 = vrcp.pop %v915
    %v1198 = vrcp.pop %v918
    %v1199 = vrcp.pop %v921
    %v1200 = vrcp.pop %v924
    %v1201 = vrcp.pop %v927
    %v1202 = vrcp.pop %v930
    %v1203 = vrcp.pop %v933
    %v1204 = vrcp.pop %v936
    %v1205 = vrcp.pop %v939
    %v1206 = vrcp.pop %v942
    %v1207 = vrcp.pop %v945
    %v1208 = vrcp.pop %v948
    %v1209 = vrcp.pop %v951
    %v1210 = vrcp.pop %v954
    %v1211 = vrcp.pop %v957
    %v1212 = vrcp.pop %v960
    %v1213 = vrcp.pop %v963
    %v1214 = vrcp.pop %v966
    %v1215 = vrcp.pop %v969
    %v1216 = vrcp.pop %v972
    %v1217 = vrcp.pop %v975
    %v1218 = vrcp.pop %v978
    %v1219 = vrcp.pop %v981
    %v1220 = vrcp.pop %v984
    %v1221 = vrcp.pop %v987
    %v1222 = vrcp.pop %v990
    %v1223 = vrcp.pop %v993
    %v1224 = vrcp.pop %v996
    %v1225 = vrcp.pop %v999
    %v1226 = vrcp.pop %v1002
    %v1227 = vrcp.pop %v1005
    %v1228 = vrcp.pop %v1008
    %v1261 = vlaneseq
    %v1262 = vand.u32 %v1261, 127
    %v1263 = vperm.slane %v1197, %v1262
    %v1264 = vadd.s32 %v1262, 4294967288
    %v1265 = vperm.slane %v1198, %v1264
    %vm1266 = vcmask 130112
    %v1267 = vsel %vm1266, %v1265, %v1263
    %v1268 = vadd.s32 %v1262, 4294967280
    %v1269 = vperm.slane %v1199, %v1268
    %vm1270 = vcmask 195712
    %v1271 = vsel %vm1270, %v1269, %v1267
    %v1272 = vadd.s32 %v1262, 4294967272
    %v1273 = vperm.slane %v1200, %v1272
    %vm1274 = vcmask 261312
    %v1275 = vsel %vm1274, %v1273, %v1271
    %v1276 = vadd.s32 %v1262, 4294967264
    %v1277 = vperm.slane %v1201, %v1276
    %vm1278 = vcmask 326912
    %v1279 = vsel %vm1278, %v1277, %v1275
    %v1280 = vadd.s32 %v1262, 4294967256
    %v1281 = vperm.slane %v1202, %v1280
    %vm1282 = vcmask 392512
    %v1283 = vsel %vm1282, %v1281, %v1279
    %v1284 = vadd.s32 %v1262, 4294967248
    %v1285 = vperm.slane %v1203, %v1284
    %vm1286 = vcmask 458112
    %v1287 = vsel %vm1286, %v1285, %v1283
    %v1288 = vadd.s32 %v1262, 4294967240
    %v1289 = vperm.slane %v1204, %v1288
    %vm1290 = vcmask 523712
    %v1291 = vsel %vm1290, %v1289, %v1287
    %v1292 = vperm.slane %v1205, %v1262
    %v1293 = vperm.slane %v1206, %v1264
    %v1294 = vsel %vm1266, %v1293, %v1292
    %v1295 = vperm.slane %v1207, %v1268
    %v1296 = vsel %vm1270, %v1295, %v1294
    %v1297 = vperm.slane %v1208, %v1272
    %v1298 = vsel %vm1274, %v1297, %v1296
    %v1299 = vperm.slane %v1209, %v1276
    %v1300 = vsel %vm1278, %v1299, %v1298
    %v1301 = vperm.slane %v1210, %v1280
    %v1302 = vsel %vm1282, %v1301, %v1300
    %v1303 = vperm.slane %v1211, %v1284
    %v1304 = vsel %vm1286, %v1303, %v1302
    %v1305 = vperm.slane %v1212, %v1288
    %v1306 = vsel %vm1290, %v1305, %v1304
    %v1307 = vperm.slane %v1213, %v1262
    %v1308 = vperm.slane %v1214, %v1264
    %v1309 = vsel %vm1266, %v1308, %v1307
    %v1310 = vperm.slane %v1215, %v1268
    %v1311 = vsel %vm1270, %v1310, %v1309
    %v1312 = vperm.slane %v1216, %v1272
    %v1313 = vsel %vm1274, %v1312, %v1311
    %v1314 = vperm.slane %v1217, %v1276
    %v1315 = vsel %vm1278, %v1314, %v1313
    %v1316 = vperm.slane %v1218, %v1280
    %v1317 = vsel %vm1282, %v1316, %v1315
    %v1318 = vperm.slane %v1219, %v1284
    %v1319 = vsel %vm1286, %v1318, %v1317
    %v1320 = vperm.slane %v1220, %v1288
    %v1321 = vsel %vm1290, %v1320, %v1319
    %v1322 = vperm.slane %v1221, %v1262
    %v1323 = vperm.slane %v1222, %v1264
    %v1324 = vsel %vm1266, %v1323, %v1322
    %v1325 = vperm.slane %v1223, %v1268
    %v1326 = vsel %vm1270, %v1325, %v1324
    %v1327 = vperm.slane %v1224, %v1272
    %v1328 = vsel %vm1274, %v1327, %v1326
    %v1329 = vperm.slane %v1225, %v1276
    %v1330 = vsel %vm1278, %v1329, %v1328
    %v1331 = vperm.slane %v1226, %v1280
    %v1332 = vsel %vm1282, %v1331, %v1330
    %v1333 = vperm.slane %v1227, %v1284
    %v1334 = vsel %vm1286, %v1333, %v1332
    %v1335 = vperm.slane %v1228, %v1288
    %v1336 = vsel %vm1290, %v1335, %v1334
    %vm1337 = vcmask 1042434
    %v1338 = vsel %vm1337, %v1291, %v1291
    %vm1339 = vcmask 1043459
    %v1340 = vsel %vm1339, %v1291, %v1338
    %vm1341 = vcmask 1044484
    %v1342 = vsel %vm1341, %v1291, %v1340
    %vm1343 = vcmask 1045509
    %v1344 = vsel %vm1343, %v1291, %v1342
    %vm1345 = vcmask 1046534
    %v1346 = vsel %vm1345, %v1291, %v1344
    %vm1347 = vcmask 1047559
    %v1348 = vsel %vm1347, %v1291, %v1346
    %v1349 = vsel %vm1337, %v1306, %v1306
    %v1350 = vsel %vm1339, %v1306, %v1349
    %v1351 = vsel %vm1341, %v1306, %v1350
    %v1352 = vsel %vm1343, %v1306, %v1351
    %v1353 = vsel %vm1345, %v1306, %v1352
    %v1354 = vsel %vm1347, %v1306, %v1353
    %v1355 = vsel %vm1337, %v1321, %v1321
    %v1356 = vsel %vm1339, %v1321, %v1355
    %v1357 = vsel %vm1341, %v1321, %v1356
    %v1358 = vsel %vm1343, %v1321, %v1357
    %v1359 = vsel %vm1345, %v1321, %v1358
    %v1360 = vsel %vm1347, %v1321, %v1359
    %v1361 = vsel %vm1337, %v1336, %v1336
    %v1362 = vsel %vm1339, %v1336, %v1361
    %v1363 = vsel %vm1341, %v1336, %v1362
    %v1364 = vsel %vm1343, %v1336, %v1363
    %v1365 = vsel %vm1345, %v1336, %v1364
    %v1366 = vsel %vm1347, %v1336, %v1365
    %v1371 = vmul.f32 %v1054, %v1348
    %v1372 = vmul.f32 %v1101, %v1354
    %v1373 = vmul.f32 %v1148, %v1360
    %v1374 = vmul.f32 %v1195, %v1366
    %1376 = vrot.lane.b32.xlu0 %v296, 64
    %v1377 = vpop.permute.xlu0 %1376
    %1379 = vxpose.xlu0.b32.start [1/16] %v1377, 128
    %1380 = vxpose.xlu0.b32.cont [2/16] 0.0, 128
    %1381 = vxpose.xlu0.b32.cont [3/16] 0.0, 128
    %1382 = vxpose.xlu0.b32.cont [4/16] 0.0, 128
    %1383 = vxpose.xlu0.b32.cont [5/16] 0.0, 128
    %1384 = vxpose.xlu0.b32.cont [6/16] 0.0, 128
    %1385 = vxpose.xlu0.b32.cont [7/16] 0.0, 128
    %1386 = vxpose.xlu0.b32.cont [8/16] 0.0, 128
    %1387 = vxpose.xlu0.b32.cont [9/16] 0.0, 128
    %1388 = vxpose.xlu0.b32.cont [10/16] 0.0, 128
    %1389 = vxpose.xlu0.b32.cont [11/16] 0.0, 128
    %1390 = vxpose.xlu0.b32.cont [12/16] 0.0, 128
    %1391 = vxpose.xlu0.b32.cont [13/16] 0.0, 128
    %1392 = vxpose.xlu0.b32.cont [14/16] 0.0, 128
    %1393 = vxpose.xlu0.b32.cont [15/16] 0.0, 128
    %1394 = vxpose.xlu0.b32.end [16/16] 0.0, 128
    %v1395 = vpop.trf.xlu0
    %v1396 = vpop.trf.xlu0
    %v1397 = vpop.trf.xlu0
    %v1398 = vpop.trf.xlu0
    %v1399 = vpop.trf.xlu0
    %v1400 = vpop.trf.xlu0
    %v1401 = vpop.trf.xlu0
    %v1402 = vpop.trf.xlu0
    %v1403 = vpop.trf.xlu0
    %v1404 = vpop.trf.xlu0
    %v1405 = vpop.trf.xlu0
    %v1406 = vpop.trf.xlu0
    %v1407 = vpop.trf.xlu0
    %v1408 = vpop.trf.xlu0
    %v1409 = vpop.trf.xlu0
    %v1410 = vpop.trf.xlu0
    %1412 = vrot.lane.b32.xlu0 %v308, 64
    %v1413 = vpop.permute.xlu0 %1412
    %v1416 = vsel %vm363, %v1395, 0
    %v1419 = vsel %vm363, %v1396, 0
    %v1422 = vsel %vm363, %v1397, 0
    %v1425 = vsel %vm363, %v1398, 0
    %v1428 = vsel %vm363, %v1399, 0
    %v1431 = vsel %vm363, %v1400, 0
    %v1434 = vsel %vm363, %v1401, 0
    %v1437 = vsel %vm363, %v1402, 0
    %1439 = vmatpush.msra.mxu0 0.0
    %1440 = vmatpush.msra.mxu0 0.0
    %1441 = vmatpush.msra.mxu0 0.0
    %1442 = vmatpush.msra.mxu0 0.0
    %1443 = vmatpush.msra.mxu0 0.0
    %1444 = vmatpush.msra.mxu0 0.0
    %1445 = vmatpush.msra.mxu0 0.0
    %1446 = vmatpush.msra.mxu0 0.0
    %1447 = vmatpush.msra.mxu0 0.0
    %1448 = vmatpush.msra.mxu0 0.0
    %1449 = vmatpush.msra.mxu0 0.0
    %1450 = vmatpush.msra.mxu0 0.0
    %1451 = vmatpush.msra.mxu0 0.0
    %1452 = vmatpush.msra.mxu0 0.0
    %1453 = vmatpush.msra.mxu0 0.0
    %1454 = vmatpush.msra.mxu0 %v1413
    %1455 = vmatmul.f32.gmra.mxu0 %v1416
    %v1456 = vpop.f32.mrf.mxu0
    %v1457 = vadd.f32 0.0, %v1456
    %1458 = vmatmul.f32.gmra.mxu0 %v1419
    %v1459 = vpop.f32.mrf.mxu0
    %v1460 = vadd.f32 0.0, %v1459
    %1461 = vmatmul.f32.gmra.mxu0 %v1422
    %v1462 = vpop.f32.mrf.mxu0
    %v1463 = vadd.f32 0.0, %v1462
    %1464 = vmatmul.f32.gmra.mxu0 %v1425
    %v1465 = vpop.f32.mrf.mxu0
    %v1466 = vadd.f32 0.0, %v1465
    %1467 = vmatmul.f32.gmra.mxu0 %v1428
    %v1468 = vpop.f32.mrf.mxu0
    %v1469 = vadd.f32 0.0, %v1468
    %1470 = vmatmul.f32.gmra.mxu0 %v1431
    %v1471 = vpop.f32.mrf.mxu0
    %v1472 = vadd.f32 0.0, %v1471
    %1473 = vmatmul.f32.gmra.mxu0 %v1434
    %v1474 = vpop.f32.mrf.mxu0
    %v1475 = vadd.f32 0.0, %v1474
    %1476 = vmatmul.f32.gmra.mxu0 %v1437
    %v1477 = vpop.f32.mrf.mxu0
    %v1478 = vadd.f32 0.0, %v1477
    %1479 = vdwg.mxu0
    %1481 = vrot.lane.b32.xlu0 %v299, 64
    %v1482 = vpop.permute.xlu0 %1481
    %1484 = vxpose.xlu0.b32.start [1/16] %v1482, 128
    %1485 = vxpose.xlu0.b32.cont [2/16] 0.0, 128
    %1486 = vxpose.xlu0.b32.cont [3/16] 0.0, 128
    %1487 = vxpose.xlu0.b32.cont [4/16] 0.0, 128
    %1488 = vxpose.xlu0.b32.cont [5/16] 0.0, 128
    %1489 = vxpose.xlu0.b32.cont [6/16] 0.0, 128
    %1490 = vxpose.xlu0.b32.cont [7/16] 0.0, 128
    %1491 = vxpose.xlu0.b32.cont [8/16] 0.0, 128
    %1492 = vxpose.xlu0.b32.cont [9/16] 0.0, 128
    %1493 = vxpose.xlu0.b32.cont [10/16] 0.0, 128
    %1494 = vxpose.xlu0.b32.cont [11/16] 0.0, 128
    %1495 = vxpose.xlu0.b32.cont [12/16] 0.0, 128
    %1496 = vxpose.xlu0.b32.cont [13/16] 0.0, 128
    %1497 = vxpose.xlu0.b32.cont [14/16] 0.0, 128
    %1498 = vxpose.xlu0.b32.cont [15/16] 0.0, 128
    %1499 = vxpose.xlu0.b32.end [16/16] 0.0, 128
    %v1500 = vpop.trf.xlu0
    %v1501 = vpop.trf.xlu0
    %v1502 = vpop.trf.xlu0
    %v1503 = vpop.trf.xlu0
    %v1504 = vpop.trf.xlu0
    %v1505 = vpop.trf.xlu0
    %v1506 = vpop.trf.xlu0
    %v1507 = vpop.trf.xlu0
    %v1508 = vpop.trf.xlu0
    %v1509 = vpop.trf.xlu0
    %v1510 = vpop.trf.xlu0
    %v1511 = vpop.trf.xlu0
    %v1512 = vpop.trf.xlu0
    %v1513 = vpop.trf.xlu0
    %v1514 = vpop.trf.xlu0
    %v1515 = vpop.trf.xlu0
    %1517 = vrot.lane.b32.xlu0 %v311, 64
    %v1518 = vpop.permute.xlu0 %1517
    %v1521 = vsel %vm363, %v1500, 0
    %v1524 = vsel %vm363, %v1501, 0
    %v1527 = vsel %vm363, %v1502, 0
    %v1530 = vsel %vm363, %v1503, 0
    %v1533 = vsel %vm363, %v1504, 0
    %v1536 = vsel %vm363, %v1505, 0
    %v1539 = vsel %vm363, %v1506, 0
    %v1542 = vsel %vm363, %v1507, 0
    %1544 = vmatpush.msra.mxu0 0.0
    %1545 = vmatpush.msra.mxu0 0.0
    %1546 = vmatpush.msra.mxu0 0.0
    %1547 = vmatpush.msra.mxu0 0.0
    %1548 = vmatpush.msra.mxu0 0.0
    %1549 = vmatpush.msra.mxu0 0.0
    %1550 = vmatpush.msra.mxu0 0.0
    %1551 = vmatpush.msra.mxu0 0.0
    %1552 = vmatpush.msra.mxu0 0.0
    %1553 = vmatpush.msra.mxu0 0.0
    %1554 = vmatpush.msra.mxu0 0.0
    %1555 = vmatpush.msra.mxu0 0.0
    %1556 = vmatpush.msra.mxu0 0.0
    %1557 = vmatpush.msra.mxu0 0.0
    %1558 = vmatpush.msra.mxu0 0.0
    %1559 = vmatpush.msra.mxu0 %v1518
    %1560 = vmatmul.f32.gmra.mxu0 %v1521
    %v1561 = vpop.f32.mrf.mxu0
    %v1562 = vadd.f32 0.0, %v1561
    %1563 = vmatmul.f32.gmra.mxu0 %v1524
    %v1564 = vpop.f32.mrf.mxu0
    %v1565 = vadd.f32 0.0, %v1564
    %1566 = vmatmul.f32.gmra.mxu0 %v1527
    %v1567 = vpop.f32.mrf.mxu0
    %v1568 = vadd.f32 0.0, %v1567
    %1569 = vmatmul.f32.gmra.mxu0 %v1530
    %v1570 = vpop.f32.mrf.mxu0
    %v1571 = vadd.f32 0.0, %v1570
    %1572 = vmatmul.f32.gmra.mxu0 %v1533
    %v1573 = vpop.f32.mrf.mxu0
    %v1574 = vadd.f32 0.0, %v1573
    %1575 = vmatmul.f32.gmra.mxu0 %v1536
    %v1576 = vpop.f32.mrf.mxu0
    %v1577 = vadd.f32 0.0, %v1576
    %1578 = vmatmul.f32.gmra.mxu0 %v1539
    %v1579 = vpop.f32.mrf.mxu0
    %v1580 = vadd.f32 0.0, %v1579
    %1581 = vmatmul.f32.gmra.mxu0 %v1542
    %v1582 = vpop.f32.mrf.mxu0
    %v1583 = vadd.f32 0.0, %v1582
    %1584 = vdwg.mxu0
    %1586 = vrot.lane.b32.xlu0 %v302, 64
    %v1587 = vpop.permute.xlu0 %1586
    %1589 = vxpose.xlu0.b32.start [1/16] %v1587, 128
    %1590 = vxpose.xlu0.b32.cont [2/16] 0.0, 128
    %1591 = vxpose.xlu0.b32.cont [3/16] 0.0, 128
    %1592 = vxpose.xlu0.b32.cont [4/16] 0.0, 128
    %1593 = vxpose.xlu0.b32.cont [5/16] 0.0, 128
    %1594 = vxpose.xlu0.b32.cont [6/16] 0.0, 128
    %1595 = vxpose.xlu0.b32.cont [7/16] 0.0, 128
    %1596 = vxpose.xlu0.b32.cont [8/16] 0.0, 128
    %1597 = vxpose.xlu0.b32.cont [9/16] 0.0, 128
    %1598 = vxpose.xlu0.b32.cont [10/16] 0.0, 128
    %1599 = vxpose.xlu0.b32.cont [11/16] 0.0, 128
    %1600 = vxpose.xlu0.b32.cont [12/16] 0.0, 128
    %1601 = vxpose.xlu0.b32.cont [13/16] 0.0, 128
    %1602 = vxpose.xlu0.b32.cont [14/16] 0.0, 128
    %1603 = vxpose.xlu0.b32.cont [15/16] 0.0, 128
    %1604 = vxpose.xlu0.b32.end [16/16] 0.0, 128
    %v1605 = vpop.trf.xlu0
    %v1606 = vpop.trf.xlu0
    %v1607 = vpop.trf.xlu0
    %v1608 = vpop.trf.xlu0
    %v1609 = vpop.trf.xlu0
    %v1610 = vpop.trf.xlu0
    %v1611 = vpop.trf.xlu0
    %v1612 = vpop.trf.xlu0
    %v1613 = vpop.trf.xlu0
    %v1614 = vpop.trf.xlu0
    %v1615 = vpop.trf.xlu0
    %v1616 = vpop.trf.xlu0
    %v1617 = vpop.trf.xlu0
    %v1618 = vpop.trf.xlu0
    %v1619 = vpop.trf.xlu0
    %v1620 = vpop.trf.xlu0
    %1622 = vrot.lane.b32.xlu0 %v314, 64
    %v1623 = vpop.permute.xlu0 %1622
    %v1626 = vsel %vm363, %v1605, 0
    %v1629 = vsel %vm363, %v1606, 0
    %v1632 = vsel %vm363, %v1607, 0
    %v1635 = vsel %vm363, %v1608, 0
    %v1638 = vsel %vm363, %v1609, 0
    %v1641 = vsel %vm363, %v1610, 0
    %v1644 = vsel %vm363, %v1611, 0
    %v1647 = vsel %vm363, %v1612, 0
    %1649 = vmatpush.msra.mxu0 0.0
    %1650 = vmatpush.msra.mxu0 0.0
    %1651 = vmatpush.msra.mxu0 0.0
    %1652 = vmatpush.msra.mxu0 0.0
    %1653 = vmatpush.msra.mxu0 0.0
    %1654 = vmatpush.msra.mxu0 0.0
    %1655 = vmatpush.msra.mxu0 0.0
    %1656 = vmatpush.msra.mxu0 0.0
    %1657 = vmatpush.msra.mxu0 0.0
    %1658 = vmatpush.msra.mxu0 0.0
    %1659 = vmatpush.msra.mxu0 0.0
    %1660 = vmatpush.msra.mxu0 0.0
    %1661 = vmatpush.msra.mxu0 0.0
    %1662 = vmatpush.msra.mxu0 0.0
    %1663 = vmatpush.msra.mxu0 0.0
    %1664 = vmatpush.msra.mxu0 %v1623
    %1665 = vmatmul.f32.gmra.mxu0 %v1626
    %v1666 = vpop.f32.mrf.mxu0
    %v1667 = vadd.f32 0.0, %v1666
    %1668 = vmatmul.f32.gmra.mxu0 %v1629
    %v1669 = vpop.f32.mrf.mxu0
    %v1670 = vadd.f32 0.0, %v1669
    %1671 = vmatmul.f32.gmra.mxu0 %v1632
    %v1672 = vpop.f32.mrf.mxu0
    %v1673 = vadd.f32 0.0, %v1672
    %1674 = vmatmul.f32.gmra.mxu0 %v1635
    %v1675 = vpop.f32.mrf.mxu0
    %v1676 = vadd.f32 0.0, %v1675
    %1677 = vmatmul.f32.gmra.mxu0 %v1638
    %v1678 = vpop.f32.mrf.mxu0
    %v1679 = vadd.f32 0.0, %v1678
    %1680 = vmatmul.f32.gmra.mxu0 %v1641
    %v1681 = vpop.f32.mrf.mxu0
    %v1682 = vadd.f32 0.0, %v1681
    %1683 = vmatmul.f32.gmra.mxu0 %v1644
    %v1684 = vpop.f32.mrf.mxu0
    %v1685 = vadd.f32 0.0, %v1684
    %1686 = vmatmul.f32.gmra.mxu0 %v1647
    %v1687 = vpop.f32.mrf.mxu0
    %v1688 = vadd.f32 0.0, %v1687
    %1689 = vdwg.mxu0
    %1691 = vrot.lane.b32.xlu0 %v305, 64
    %v1692 = vpop.permute.xlu0 %1691
    %1694 = vxpose.xlu0.b32.start [1/16] %v1692, 128
    %1695 = vxpose.xlu0.b32.cont [2/16] 0.0, 128
    %1696 = vxpose.xlu0.b32.cont [3/16] 0.0, 128
    %1697 = vxpose.xlu0.b32.cont [4/16] 0.0, 128
    %1698 = vxpose.xlu0.b32.cont [5/16] 0.0, 128
    %1699 = vxpose.xlu0.b32.cont [6/16] 0.0, 128
    %1700 = vxpose.xlu0.b32.cont [7/16] 0.0, 128
    %1701 = vxpose.xlu0.b32.cont [8/16] 0.0, 128
    %1702 = vxpose.xlu0.b32.cont [9/16] 0.0, 128
    %1703 = vxpose.xlu0.b32.cont [10/16] 0.0, 128
    %1704 = vxpose.xlu0.b32.cont [11/16] 0.0, 128
    %1705 = vxpose.xlu0.b32.cont [12/16] 0.0, 128
    %1706 = vxpose.xlu0.b32.cont [13/16] 0.0, 128
    %1707 = vxpose.xlu0.b32.cont [14/16] 0.0, 128
    %1708 = vxpose.xlu0.b32.cont [15/16] 0.0, 128
    %1709 = vxpose.xlu0.b32.end [16/16] 0.0, 128
    %v1710 = vpop.trf.xlu0
    %v1711 = vpop.trf.xlu0
    %v1712 = vpop.trf.xlu0
    %v1713 = vpop.trf.xlu0
    %v1714 = vpop.trf.xlu0
    %v1715 = vpop.trf.xlu0
    %v1716 = vpop.trf.xlu0
    %v1717 = vpop.trf.xlu0
    %v1718 = vpop.trf.xlu0
    %v1719 = vpop.trf.xlu0
    %v1720 = vpop.trf.xlu0
    %v1721 = vpop.trf.xlu0
    %v1722 = vpop.trf.xlu0
    %v1723 = vpop.trf.xlu0
    %v1724 = vpop.trf.xlu0
    %v1725 = vpop.trf.xlu0
    %1727 = vrot.lane.b32.xlu0 %v317, 64
    %v1728 = vpop.permute.xlu0 %1727
    %v1731 = vsel %vm363, %v1710, 0
    %v1734 = vsel %vm363, %v1711, 0
    %v1737 = vsel %vm363, %v1712, 0
    %v1740 = vsel %vm363, %v1713, 0
    %v1743 = vsel %vm363, %v1714, 0
    %v1746 = vsel %vm363, %v1715, 0
    %v1749 = vsel %vm363, %v1716, 0
    %v1752 = vsel %vm363, %v1717, 0
    %1754 = vmatpush.msra.mxu0 0.0
    %1755 = vmatpush.msra.mxu0 0.0
    %1756 = vmatpush.msra.mxu0 0.0
    %1757 = vmatpush.msra.mxu0 0.0
    %1758 = vmatpush.msra.mxu0 0.0
    %1759 = vmatpush.msra.mxu0 0.0
    %1760 = vmatpush.msra.mxu0 0.0
    %1761 = vmatpush.msra.mxu0 0.0
    %1762 = vmatpush.msra.mxu0 0.0
    %1763 = vmatpush.msra.mxu0 0.0
    %1764 = vmatpush.msra.mxu0 0.0
    %1765 = vmatpush.msra.mxu0 0.0
    %1766 = vmatpush.msra.mxu0 0.0
    %1767 = vmatpush.msra.mxu0 0.0
    %1768 = vmatpush.msra.mxu0 0.0
    %1769 = vmatpush.msra.mxu0 %v1728
    %1770 = vmatmul.f32.gmra.mxu0 %v1731
    %v1771 = vpop.f32.mrf.mxu0
    %v1772 = vadd.f32 0.0, %v1771
    %1773 = vmatmul.f32.gmra.mxu0 %v1734
    %v1774 = vpop.f32.mrf.mxu0
    %v1775 = vadd.f32 0.0, %v1774
    %1776 = vmatmul.f32.gmra.mxu0 %v1737
    %v1777 = vpop.f32.mrf.mxu0
    %v1778 = vadd.f32 0.0, %v1777
    %1779 = vmatmul.f32.gmra.mxu0 %v1740
    %v1780 = vpop.f32.mrf.mxu0
    %v1781 = vadd.f32 0.0, %v1780
    %1782 = vmatmul.f32.gmra.mxu0 %v1743
    %v1783 = vpop.f32.mrf.mxu0
    %v1784 = vadd.f32 0.0, %v1783
    %1785 = vmatmul.f32.gmra.mxu0 %v1746
    %v1786 = vpop.f32.mrf.mxu0
    %v1787 = vadd.f32 0.0, %v1786
    %1788 = vmatmul.f32.gmra.mxu0 %v1749
    %v1789 = vpop.f32.mrf.mxu0
    %v1790 = vadd.f32 0.0, %v1789
    %1791 = vmatmul.f32.gmra.mxu0 %v1752
    %v1792 = vpop.f32.mrf.mxu0
    %v1793 = vadd.f32 0.0, %v1792
    %1794 = vdwg.mxu0
    %v1795 = vsel %vm720, %v1457, -inf
    %1796 = vmax.xlane.f32.xlu0 %v1795
    %v1797 = vpop.xlane.xlu0 %1796
    %v1798 = vsel %vm720, %v1460, -inf
    %1799 = vmax.xlane.f32.xlu0 %v1798
    %v1800 = vpop.xlane.xlu0 %1799
    %v1801 = vsel %vm720, %v1463, -inf
    %1802 = vmax.xlane.f32.xlu0 %v1801
    %v1803 = vpop.xlane.xlu0 %1802
    %v1804 = vsel %vm720, %v1466, -inf
    %1805 = vmax.xlane.f32.xlu0 %v1804
    %v1806 = vpop.xlane.xlu0 %1805
    %v1807 = vsel %vm720, %v1469, -inf
    %1808 = vmax.xlane.f32.xlu0 %v1807
    %v1809 = vpop.xlane.xlu0 %1808
    %v1810 = vsel %vm720, %v1472, -inf
    %1811 = vmax.xlane.f32.xlu0 %v1810
    %v1812 = vpop.xlane.xlu0 %1811
    %v1813 = vsel %vm720, %v1475, -inf
    %1814 = vmax.xlane.f32.xlu0 %v1813
    %v1815 = vpop.xlane.xlu0 %1814
    %v1816 = vsel %vm720, %v1478, -inf
    %1817 = vmax.xlane.f32.xlu0 %v1816
    %v1818 = vpop.xlane.xlu0 %1817
    %v1819 = vsel %vm720, %v1562, -inf
    %1820 = vmax.xlane.f32.xlu0 %v1819
    %v1821 = vpop.xlane.xlu0 %1820
    %v1822 = vsel %vm720, %v1565, -inf
    %1823 = vmax.xlane.f32.xlu0 %v1822
    %v1824 = vpop.xlane.xlu0 %1823
    %v1825 = vsel %vm720, %v1568, -inf
    %1826 = vmax.xlane.f32.xlu0 %v1825
    %v1827 = vpop.xlane.xlu0 %1826
    %v1828 = vsel %vm720, %v1571, -inf
    %1829 = vmax.xlane.f32.xlu0 %v1828
    %v1830 = vpop.xlane.xlu0 %1829
    %v1831 = vsel %vm720, %v1574, -inf
    %1832 = vmax.xlane.f32.xlu0 %v1831
    %v1833 = vpop.xlane.xlu0 %1832
    %v1834 = vsel %vm720, %v1577, -inf
    %1835 = vmax.xlane.f32.xlu0 %v1834
    %v1836 = vpop.xlane.xlu0 %1835
    %v1837 = vsel %vm720, %v1580, -inf
    %1838 = vmax.xlane.f32.xlu0 %v1837
    %v1839 = vpop.xlane.xlu0 %1838
    %v1840 = vsel %vm720, %v1583, -inf
    %1841 = vmax.xlane.f32.xlu0 %v1840
    %v1842 = vpop.xlane.xlu0 %1841
    %v1843 = vsel %vm720, %v1667, -inf
    %1844 = vmax.xlane.f32.xlu0 %v1843
    %v1845 = vpop.xlane.xlu0 %1844
    %v1846 = vsel %vm720, %v1670, -inf
    %1847 = vmax.xlane.f32.xlu0 %v1846
    %v1848 = vpop.xlane.xlu0 %1847
    %v1849 = vsel %vm720, %v1673, -inf
    %1850 = vmax.xlane.f32.xlu0 %v1849
    %v1851 = vpop.xlane.xlu0 %1850
    %v1852 = vsel %vm720, %v1676, -inf
    %1853 = vmax.xlane.f32.xlu0 %v1852
    %v1854 = vpop.xlane.xlu0 %1853
    %v1855 = vsel %vm720, %v1679, -inf
    %1856 = vmax.xlane.f32.xlu0 %v1855
    %v1857 = vpop.xlane.xlu0 %1856
    %v1858 = vsel %vm720, %v1682, -inf
    %1859 = vmax.xlane.f32.xlu0 %v1858
    %v1860 = vpop.xlane.xlu0 %1859
    %v1861 = vsel %vm720, %v1685, -inf
    %1862 = vmax.xlane.f32.xlu0 %v1861
    %v1863 = vpop.xlane.xlu0 %1862
    %v1864 = vsel %vm720, %v1688, -inf
    %1865 = vmax.xlane.f32.xlu0 %v1864
    %v1866 = vpop.xlane.xlu0 %1865
    %v1867 = vsel %vm720, %v1772, -inf
    %1868 = vmax.xlane.f32.xlu0 %v1867
    %v1869 = vpop.xlane.xlu0 %1868
    %v1870 = vsel %vm720, %v1775, -inf
    %1871 = vmax.xlane.f32.xlu0 %v1870
    %v1872 = vpop.xlane.xlu0 %1871
    %v1873 = vsel %vm720, %v1778, -inf
    %1874 = vmax.xlane.f32.xlu0 %v1873
    %v1875 = vpop.xlane.xlu0 %1874
    %v1876 = vsel %vm720, %v1781, -inf
    %1877 = vmax.xlane.f32.xlu0 %v1876
    %v1878 = vpop.xlane.xlu0 %1877
    %v1879 = vsel %vm720, %v1784, -inf
    %1880 = vmax.xlane.f32.xlu0 %v1879
    %v1881 = vpop.xlane.xlu0 %1880
    %v1882 = vsel %vm720, %v1787, -inf
    %1883 = vmax.xlane.f32.xlu0 %v1882
    %v1884 = vpop.xlane.xlu0 %1883
    %v1885 = vsel %vm720, %v1790, -inf
    %1886 = vmax.xlane.f32.xlu0 %v1885
    %v1887 = vpop.xlane.xlu0 %1886
    %v1888 = vsel %vm720, %v1793, -inf
    %1889 = vmax.xlane.f32.xlu0 %v1888
    %v1890 = vpop.xlane.xlu0 %1889
    %v1891 = vsub.f32 %v1457, %v1797
    %v1892 = vsub.f32 %v1460, %v1800
    %v1893 = vsub.f32 %v1463, %v1803
    %v1894 = vsub.f32 %v1466, %v1806
    %v1895 = vsub.f32 %v1469, %v1809
    %v1896 = vsub.f32 %v1472, %v1812
    %v1897 = vsub.f32 %v1475, %v1815
    %v1898 = vsub.f32 %v1478, %v1818
    %v1899 = vsub.f32 %v1562, %v1821
    %v1900 = vsub.f32 %v1565, %v1824
    %v1901 = vsub.f32 %v1568, %v1827
    %v1902 = vsub.f32 %v1571, %v1830
    %v1903 = vsub.f32 %v1574, %v1833
    %v1904 = vsub.f32 %v1577, %v1836
    %v1905 = vsub.f32 %v1580, %v1839
    %v1906 = vsub.f32 %v1583, %v1842
    %v1907 = vsub.f32 %v1667, %v1845
    %v1908 = vsub.f32 %v1670, %v1848
    %v1909 = vsub.f32 %v1673, %v1851
    %v1910 = vsub.f32 %v1676, %v1854
    %v1911 = vsub.f32 %v1679, %v1857
    %v1912 = vsub.f32 %v1682, %v1860
    %v1913 = vsub.f32 %v1685, %v1863
    %v1914 = vsub.f32 %v1688, %v1866
    %v1915 = vsub.f32 %v1772, %v1869
    %v1916 = vsub.f32 %v1775, %v1872
    %v1917 = vsub.f32 %v1778, %v1875
    %v1918 = vsub.f32 %v1781, %v1878
    %v1919 = vsub.f32 %v1784, %v1881
    %v1920 = vsub.f32 %v1787, %v1884
    %v1921 = vsub.f32 %v1790, %v1887
    %v1922 = vsub.f32 %v1793, %v1890
    %v1923 = vmul.f32 %v1891, 1.442695
    %v1924 = vpow.pop %v1923
    %v1925 = vmul.f32 %v1892, 1.442695
    %v1926 = vpow.pop %v1925
    %v1927 = vmul.f32 %v1893, 1.442695
    %v1928 = vpow.pop %v1927
    %v1929 = vmul.f32 %v1894, 1.442695
    %v1930 = vpow.pop %v1929
    %v1931 = vmul.f32 %v1895, 1.442695
    %v1932 = vpow.pop %v1931
    %v1933 = vmul.f32 %v1896, 1.442695
    %v1934 = vpow.pop %v1933
    %v1935 = vmul.f32 %v1897, 1.442695
    %v1936 = vpow.pop %v1935
    %v1937 = vmul.f32 %v1898, 1.442695
    %v1938 = vpow.pop %v1937
    %v1939 = vmul.f32 %v1899, 1.442695
    %v1940 = vpow.pop %v1939
    %v1941 = vmul.f32 %v1900, 1.442695
    %v1942 = vpow.pop %v1941
    %v1943 = vmul.f32 %v1901, 1.442695
    %v1944 = vpow.pop %v1943
    %v1945 = vmul.f32 %v1902, 1.442695
    %v1946 = vpow.pop %v1945
    %v1947 = vmul.f32 %v1903, 1.442695
    %v1948 = vpow.pop %v1947
    %v1949 = vmul.f32 %v1904, 1.442695
    %v1950 = vpow.pop %v1949
    %v1951 = vmul.f32 %v1905, 1.442695
    %v1952 = vpow.pop %v1951
    %v1953 = vmul.f32 %v1906, 1.442695
    %v1954 = vpow.pop %v1953
    %v1955 = vmul.f32 %v1907, 1.442695
    %v1956 = vpow.pop %v1955
    %v1957 = vmul.f32 %v1908, 1.442695
    %v1958 = vpow.pop %v1957
    %v1959 = vmul.f32 %v1909, 1.442695
    %v1960 = vpow.pop %v1959
    %v1961 = vmul.f32 %v1910, 1.442695
    %v1962 = vpow.pop %v1961
    %v1963 = vmul.f32 %v1911, 1.442695
    %v1964 = vpow.pop %v1963
    %v1965 = vmul.f32 %v1912, 1.442695
    %v1966 = vpow.pop %v1965
    %v1967 = vmul.f32 %v1913, 1.442695
    %v1968 = vpow.pop %v1967
    %v1969 = vmul.f32 %v1914, 1.442695
    %v1970 = vpow.pop %v1969
    %v1971 = vmul.f32 %v1915, 1.442695
    %v1972 = vpow.pop %v1971
    %v1973 = vmul.f32 %v1916, 1.442695
    %v1974 = vpow.pop %v1973
    %v1975 = vmul.f32 %v1917, 1.442695
    %v1976 = vpow.pop %v1975
    %v1977 = vmul.f32 %v1918, 1.442695
    %v1978 = vpow.pop %v1977
    %v1979 = vmul.f32 %v1919, 1.442695
    %v1980 = vpow.pop %v1979
    %v1981 = vmul.f32 %v1920, 1.442695
    %v1982 = vpow.pop %v1981
    %v1983 = vmul.f32 %v1921, 1.442695
    %v1984 = vpow.pop %v1983
    %v1985 = vmul.f32 %v1922, 1.442695
    %v1986 = vpow.pop %v1985
    %v1987 = vsel %vm720, %v1924, 0.0
    %1988 = vadd.xlane.f32.xlu0 %v1987
    %v1989 = vpop.xlane.xlu0 %1988
    %v1990 = vsel %vm720, %v1926, 0.0
    %1991 = vadd.xlane.f32.xlu0 %v1990
    %v1992 = vpop.xlane.xlu0 %1991
    %v1993 = vsel %vm720, %v1928, 0.0
    %1994 = vadd.xlane.f32.xlu0 %v1993
    %v1995 = vpop.xlane.xlu0 %1994
    %v1996 = vsel %vm720, %v1930, 0.0
    %1997 = vadd.xlane.f32.xlu0 %v1996
    %v1998 = vpop.xlane.xlu0 %1997
    %v1999 = vsel %vm720, %v1932, 0.0
    %2000 = vadd.xlane.f32.xlu0 %v1999
    %v2001 = vpop.xlane.xlu0 %2000
    %v2002 = vsel %vm720, %v1934, 0.0
    %2003 = vadd.xlane.f32.xlu0 %v2002
    %v2004 = vpop.xlane.xlu0 %2003
    %v2005 = vsel %vm720, %v1936, 0.0
    %2006 = vadd.xlane.f32.xlu0 %v2005
    %v2007 = vpop.xlane.xlu0 %2006
    %v2008 = vsel %vm720, %v1938, 0.0
    %2009 = vadd.xlane.f32.xlu0 %v2008
    %v2010 = vpop.xlane.xlu0 %2009
    %v2011 = vsel %vm720, %v1940, 0.0
    %2012 = vadd.xlane.f32.xlu0 %v2011
    %v2013 = vpop.xlane.xlu0 %2012
    %v2014 = vsel %vm720, %v1942, 0.0
    %2015 = vadd.xlane.f32.xlu0 %v2014
    %v2016 = vpop.xlane.xlu0 %2015
    %v2017 = vsel %vm720, %v1944, 0.0
    %2018 = vadd.xlane.f32.xlu0 %v2017
    %v2019 = vpop.xlane.xlu0 %2018
    %v2020 = vsel %vm720, %v1946, 0.0
    %2021 = vadd.xlane.f32.xlu0 %v2020
    %v2022 = vpop.xlane.xlu0 %2021
    %v2023 = vsel %vm720, %v1948, 0.0
    %2024 = vadd.xlane.f32.xlu0 %v2023
    %v2025 = vpop.xlane.xlu0 %2024
    %v2026 = vsel %vm720, %v1950, 0.0
    %2027 = vadd.xlane.f32.xlu0 %v2026
    %v2028 = vpop.xlane.xlu0 %2027
    %v2029 = vsel %vm720, %v1952, 0.0
    %2030 = vadd.xlane.f32.xlu0 %v2029
    %v2031 = vpop.xlane.xlu0 %2030
    %v2032 = vsel %vm720, %v1954, 0.0
    %2033 = vadd.xlane.f32.xlu0 %v2032
    %v2034 = vpop.xlane.xlu0 %2033
    %v2035 = vsel %vm720, %v1956, 0.0
    %2036 = vadd.xlane.f32.xlu0 %v2035
    %v2037 = vpop.xlane.xlu0 %2036
    %v2038 = vsel %vm720, %v1958, 0.0
    %2039 = vadd.xlane.f32.xlu0 %v2038
    %v2040 = vpop.xlane.xlu0 %2039
    %v2041 = vsel %vm720, %v1960, 0.0
    %2042 = vadd.xlane.f32.xlu0 %v2041
    %v2043 = vpop.xlane.xlu0 %2042
    %v2044 = vsel %vm720, %v1962, 0.0
    %2045 = vadd.xlane.f32.xlu0 %v2044
    %v2046 = vpop.xlane.xlu0 %2045
    %v2047 = vsel %vm720, %v1964, 0.0
    %2048 = vadd.xlane.f32.xlu0 %v2047
    %v2049 = vpop.xlane.xlu0 %2048
    %v2050 = vsel %vm720, %v1966, 0.0
    %2051 = vadd.xlane.f32.xlu0 %v2050
    %v2052 = vpop.xlane.xlu0 %2051
    %v2053 = vsel %vm720, %v1968, 0.0
    %2054 = vadd.xlane.f32.xlu0 %v2053
    %v2055 = vpop.xlane.xlu0 %2054
    %v2056 = vsel %vm720, %v1970, 0.0
    %2057 = vadd.xlane.f32.xlu0 %v2056
    %v2058 = vpop.xlane.xlu0 %2057
    %v2059 = vsel %vm720, %v1972, 0.0
    %2060 = vadd.xlane.f32.xlu0 %v2059
    %v2061 = vpop.xlane.xlu0 %2060
    %v2062 = vsel %vm720, %v1974, 0.0
    %2063 = vadd.xlane.f32.xlu0 %v2062
    %v2064 = vpop.xlane.xlu0 %2063
    %v2065 = vsel %vm720, %v1976, 0.0
    %2066 = vadd.xlane.f32.xlu0 %v2065
    %v2067 = vpop.xlane.xlu0 %2066
    %v2068 = vsel %vm720, %v1978, 0.0
    %2069 = vadd.xlane.f32.xlu0 %v2068
    %v2070 = vpop.xlane.xlu0 %2069
    %v2071 = vsel %vm720, %v1980, 0.0
    %2072 = vadd.xlane.f32.xlu0 %v2071
    %v2073 = vpop.xlane.xlu0 %2072
    %v2074 = vsel %vm720, %v1982, 0.0
    %2075 = vadd.xlane.f32.xlu0 %v2074
    %v2076 = vpop.xlane.xlu0 %2075
    %v2077 = vsel %vm720, %v1984, 0.0
    %2078 = vadd.xlane.f32.xlu0 %v2077
    %v2079 = vpop.xlane.xlu0 %2078
    %v2080 = vsel %vm720, %v1986, 0.0
    %2081 = vadd.xlane.f32.xlu0 %v2080
    %v2082 = vpop.xlane.xlu0 %2081
    %2083 = vrot.lane.b32.xlu0 %v320, 64
    %v2084 = vpop.permute.xlu0 %2083
    %v2085 = vsel %vm720, %v2084, 0
    %v2088 = vsel %vm720, %v1924, 0
    %v2091 = vsel %vm720, %v1926, 0
    %v2094 = vsel %vm720, %v1928, 0
    %v2097 = vsel %vm720, %v1930, 0
    %v2100 = vsel %vm720, %v1932, 0
    %v2103 = vsel %vm720, %v1934, 0
    %v2106 = vsel %vm720, %v1936, 0
    %v2109 = vsel %vm720, %v1938, 0
    %2111 = vmatpush.xpose.msra.mxu0 0.0
    %2112 = vmatpush.xpose.msra.mxu0 0.0
    %2113 = vmatpush.xpose.msra.mxu0 0.0
    %2114 = vmatpush.xpose.msra.mxu0 0.0
    %2115 = vmatpush.xpose.msra.mxu0 0.0
    %2116 = vmatpush.xpose.msra.mxu0 0.0
    %2117 = vmatpush.xpose.msra.mxu0 0.0
    %2118 = vmatpush.xpose.msra.mxu0 0.0
    %2119 = vmatpush.xpose.msra.mxu0 %v2109
    %2120 = vmatpush.xpose.msra.mxu0 %v2106
    %2121 = vmatpush.xpose.msra.mxu0 %v2103
    %2122 = vmatpush.xpose.msra.mxu0 %v2100
    %2123 = vmatpush.xpose.msra.mxu0 %v2097
    %2124 = vmatpush.xpose.msra.mxu0 %v2094
    %2125 = vmatpush.xpose.msra.mxu0 %v2091
    %2126 = vmatpush.xpose.msra.mxu0 %v2088
    %2127 = vmatmul.f32.gmra.mxu0 %v2085
    %v2128 = vpop.f32.mrf.mxu0
    %v2129 = vadd.f32 0.0, %v2128
    %2130 = vdwg.mxu0
    %2131 = vrot.lane.b32.xlu0 %v323, 64
    %v2132 = vpop.permute.xlu0 %2131
    %v2133 = vsel %vm720, %v2132, 0
    %v2136 = vsel %vm720, %v1940, 0
    %v2139 = vsel %vm720, %v1942, 0
    %v2142 = vsel %vm720, %v1944, 0
    %v2145 = vsel %vm720, %v1946, 0
    %v2148 = vsel %vm720, %v1948, 0
    %v2151 = vsel %vm720, %v1950, 0
    %v2154 = vsel %vm720, %v1952, 0
    %v2157 = vsel %vm720, %v1954, 0
    %2159 = vmatpush.xpose.msra.mxu0 0.0
    %2160 = vmatpush.xpose.msra.mxu0 0.0
    %2161 = vmatpush.xpose.msra.mxu0 0.0
    %2162 = vmatpush.xpose.msra.mxu0 0.0
    %2163 = vmatpush.xpose.msra.mxu0 0.0
    %2164 = vmatpush.xpose.msra.mxu0 0.0
    %2165 = vmatpush.xpose.msra.mxu0 0.0
    %2166 = vmatpush.xpose.msra.mxu0 0.0
    %2167 = vmatpush.xpose.msra.mxu0 %v2157
    %2168 = vmatpush.xpose.msra.mxu0 %v2154
    %2169 = vmatpush.xpose.msra.mxu0 %v2151
    %2170 = vmatpush.xpose.msra.mxu0 %v2148
    %2171 = vmatpush.xpose.msra.mxu0 %v2145
    %2172 = vmatpush.xpose.msra.mxu0 %v2142
    %2173 = vmatpush.xpose.msra.mxu0 %v2139
    %2174 = vmatpush.xpose.msra.mxu0 %v2136
    %2175 = vmatmul.f32.gmra.mxu0 %v2133
    %v2176 = vpop.f32.mrf.mxu0
    %v2177 = vadd.f32 0.0, %v2176
    %2178 = vdwg.mxu0
    %2179 = vrot.lane.b32.xlu0 %v326, 64
    %v2180 = vpop.permute.xlu0 %2179
    %v2181 = vsel %vm720, %v2180, 0
    %v2184 = vsel %vm720, %v1956, 0
    %v2187 = vsel %vm720, %v1958, 0
    %v2190 = vsel %vm720, %v1960, 0
    %v2193 = vsel %vm720, %v1962, 0
    %v2196 = vsel %vm720, %v1964, 0
    %v2199 = vsel %vm720, %v1966, 0
    %v2202 = vsel %vm720, %v1968, 0
    %v2205 = vsel %vm720, %v1970, 0
    %2207 = vmatpush.xpose.msra.mxu0 0.0
    %2208 = vmatpush.xpose.msra.mxu0 0.0
    %2209 = vmatpush.xpose.msra.mxu0 0.0
    %2210 = vmatpush.xpose.msra.mxu0 0.0
    %2211 = vmatpush.xpose.msra.mxu0 0.0
    %2212 = vmatpush.xpose.msra.mxu0 0.0
    %2213 = vmatpush.xpose.msra.mxu0 0.0
    %2214 = vmatpush.xpose.msra.mxu0 0.0
    %2215 = vmatpush.xpose.msra.mxu0 %v2205
    %2216 = vmatpush.xpose.msra.mxu0 %v2202
    %2217 = vmatpush.xpose.msra.mxu0 %v2199
    %2218 = vmatpush.xpose.msra.mxu0 %v2196
    %2219 = vmatpush.xpose.msra.mxu0 %v2193
    %2220 = vmatpush.xpose.msra.mxu0 %v2190
    %2221 = vmatpush.xpose.msra.mxu0 %v2187
    %2222 = vmatpush.xpose.msra.mxu0 %v2184
    %2223 = vmatmul.f32.gmra.mxu0 %v2181
    %v2224 = vpop.f32.mrf.mxu0
    %v2225 = vadd.f32 0.0, %v2224
    %2226 = vdwg.mxu0
    %2227 = vrot.lane.b32.xlu0 %v329, 64
    %v2228 = vpop.permute.xlu0 %2227
    %v2229 = vsel %vm720, %v2228, 0
    %v2232 = vsel %vm720, %v1972, 0
    %v2235 = vsel %vm720, %v1974, 0
    %v2238 = vsel %vm720, %v1976, 0
    %v2241 = vsel %vm720, %v1978, 0
    %v2244 = vsel %vm720, %v1980, 0
    %v2247 = vsel %vm720, %v1982, 0
    %v2250 = vsel %vm720, %v1984, 0
    %v2253 = vsel %vm720, %v1986, 0
    %2255 = vmatpush.xpose.msra.mxu0 0.0
    %2256 = vmatpush.xpose.msra.mxu0 0.0
    %2257 = vmatpush.xpose.msra.mxu0 0.0
    %2258 = vmatpush.xpose.msra.mxu0 0.0
    %2259 = vmatpush.xpose.msra.mxu0 0.0
    %2260 = vmatpush.xpose.msra.mxu0 0.0
    %2261 = vmatpush.xpose.msra.mxu0 0.0
    %2262 = vmatpush.xpose.msra.mxu0 0.0
    %2263 = vmatpush.xpose.msra.mxu0 %v2253
    %2264 = vmatpush.xpose.msra.mxu0 %v2250
    %2265 = vmatpush.xpose.msra.mxu0 %v2247
    %2266 = vmatpush.xpose.msra.mxu0 %v2244
    %2267 = vmatpush.xpose.msra.mxu0 %v2241
    %2268 = vmatpush.xpose.msra.mxu0 %v2238
    %2269 = vmatpush.xpose.msra.mxu0 %v2235
    %2270 = vmatpush.xpose.msra.mxu0 %v2232
    %2271 = vmatmul.f32.gmra.mxu0 %v2229
    %v2272 = vpop.f32.mrf.mxu0
    %v2273 = vadd.f32 0.0, %v2272
    %2274 = vdwg.mxu0
    %v2275 = vrcp.pop %v1989
    %v2276 = vrcp.pop %v1992
    %v2277 = vrcp.pop %v1995
    %v2278 = vrcp.pop %v1998
    %v2279 = vrcp.pop %v2001
    %v2280 = vrcp.pop %v2004
    %v2281 = vrcp.pop %v2007
    %v2282 = vrcp.pop %v2010
    %v2283 = vrcp.pop %v2013
    %v2284 = vrcp.pop %v2016
    %v2285 = vrcp.pop %v2019
    %v2286 = vrcp.pop %v2022
    %v2287 = vrcp.pop %v2025
    %v2288 = vrcp.pop %v2028
    %v2289 = vrcp.pop %v2031
    %v2290 = vrcp.pop %v2034
    %v2291 = vrcp.pop %v2037
    %v2292 = vrcp.pop %v2040
    %v2293 = vrcp.pop %v2043
    %v2294 = vrcp.pop %v2046
    %v2295 = vrcp.pop %v2049
    %v2296 = vrcp.pop %v2052
    %v2297 = vrcp.pop %v2055
    %v2298 = vrcp.pop %v2058
    %v2299 = vrcp.pop %v2061
    %v2300 = vrcp.pop %v2064
    %v2301 = vrcp.pop %v2067
    %v2302 = vrcp.pop %v2070
    %v2303 = vrcp.pop %v2073
    %v2304 = vrcp.pop %v2076
    %v2305 = vrcp.pop %v2079
    %v2306 = vrcp.pop %v2082
    %v2339 = vperm.slane %v2275, %v1262
    %v2340 = vperm.slane %v2276, %v1264
    %v2341 = vsel %vm1266, %v2340, %v2339
    %v2342 = vperm.slane %v2277, %v1268
    %v2343 = vsel %vm1270, %v2342, %v2341
    %v2344 = vperm.slane %v2278, %v1272
    %v2345 = vsel %vm1274, %v2344, %v2343
    %v2346 = vperm.slane %v2279, %v1276
    %v2347 = vsel %vm1278, %v2346, %v2345
    %v2348 = vperm.slane %v2280, %v1280
    %v2349 = vsel %vm1282, %v2348, %v2347
    %v2350 = vperm.slane %v2281, %v1284
    %v2351 = vsel %vm1286, %v2350, %v2349
    %v2352 = vperm.slane %v2282, %v1288
    %v2353 = vsel %vm1290, %v2352, %v2351
    %v2354 = vperm.slane %v2283, %v1262
    %v2355 = vperm.slane %v2284, %v1264
    %v2356 = vsel %vm1266, %v2355, %v2354
    %v2357 = vperm.slane %v2285, %v1268
    %v2358 = vsel %vm1270, %v2357, %v2356
    %v2359 = vperm.slane %v2286, %v1272
    %v2360 = vsel %vm1274, %v2359, %v2358
    %v2361 = vperm.slane %v2287, %v1276
    %v2362 = vsel %vm1278, %v2361, %v2360
    %v2363 = vperm.slane %v2288, %v1280
    %v2364 = vsel %vm1282, %v2363, %v2362
    %v2365 = vperm.slane %v2289, %v1284
    %v2366 = vsel %vm1286, %v2365, %v2364
    %v2367 = vperm.slane %v2290, %v1288
    %v2368 = vsel %vm1290, %v2367, %v2366
    %v2369 = vperm.slane %v2291, %v1262
    %v2370 = vperm.slane %v2292, %v1264
    %v2371 = vsel %vm1266, %v2370, %v2369
    %v2372 = vperm.slane %v2293, %v1268
    %v2373 = vsel %vm1270, %v2372, %v2371
    %v2374 = vperm.slane %v2294, %v1272
    %v2375 = vsel %vm1274, %v2374, %v2373
    %v2376 = vperm.slane %v2295, %v1276
    %v2377 = vsel %vm1278, %v2376, %v2375
    %v2378 = vperm.slane %v2296, %v1280
    %v2379 = vsel %vm1282, %v2378, %v2377
    %v2380 = vperm.slane %v2297, %v1284
    %v2381 = vsel %vm1286, %v2380, %v2379
    %v2382 = vperm.slane %v2298, %v1288
    %v2383 = vsel %vm1290, %v2382, %v2381
    %v2384 = vperm.slane %v2299, %v1262
    %v2385 = vperm.slane %v2300, %v1264
    %v2386 = vsel %vm1266, %v2385, %v2384
    %v2387 = vperm.slane %v2301, %v1268
    %v2388 = vsel %vm1270, %v2387, %v2386
    %v2389 = vperm.slane %v2302, %v1272
    %v2390 = vsel %vm1274, %v2389, %v2388
    %v2391 = vperm.slane %v2303, %v1276
    %v2392 = vsel %vm1278, %v2391, %v2390
    %v2393 = vperm.slane %v2304, %v1280
    %v2394 = vsel %vm1282, %v2393, %v2392
    %v2395 = vperm.slane %v2305, %v1284
    %v2396 = vsel %vm1286, %v2395, %v2394
    %v2397 = vperm.slane %v2306, %v1288
    %v2398 = vsel %vm1290, %v2397, %v2396
    %v2399 = vsel %vm1337, %v2353, %v2353
    %v2400 = vsel %vm1339, %v2353, %v2399
    %v2401 = vsel %vm1341, %v2353, %v2400
    %v2402 = vsel %vm1343, %v2353, %v2401
    %v2403 = vsel %vm1345, %v2353, %v2402
    %v2404 = vsel %vm1347, %v2353, %v2403
    %v2405 = vsel %vm1337, %v2368, %v2368
    %v2406 = vsel %vm1339, %v2368, %v2405
    %v2407 = vsel %vm1341, %v2368, %v2406
    %v2408 = vsel %vm1343, %v2368, %v2407
    %v2409 = vsel %vm1345, %v2368, %v2408
    %v2410 = vsel %vm1347, %v2368, %v2409
    %v2411 = vsel %vm1337, %v2383, %v2383
    %v2412 = vsel %vm1339, %v2383, %v2411
    %v2413 = vsel %vm1341, %v2383, %v2412
    %v2414 = vsel %vm1343, %v2383, %v2413
    %v2415 = vsel %vm1345, %v2383, %v2414
    %v2416 = vsel %vm1347, %v2383, %v2415
    %v2417 = vsel %vm1337, %v2398, %v2398
    %v2418 = vsel %vm1339, %v2398, %v2417
    %v2419 = vsel %vm1341, %v2398, %v2418
    %v2420 = vsel %vm1343, %v2398, %v2419
    %v2421 = vsel %vm1345, %v2398, %v2420
    %v2422 = vsel %vm1347, %v2398, %v2421
    %v2427 = vmul.f32 %v2129, %v2404
    %v2428 = vmul.f32 %v2177, %v2410
    %v2429 = vmul.f32 %v2225, %v2416
    %v2430 = vmul.f32 %v2273, %v2422
    %2435 = vrot.lane.b32.xlu0 %v2427, 64
    %v2436 = vpop.permute.xlu0 %2435
    %2437 = vrot.lane.b32.xlu0 %v2428, 64
    %v2438 = vpop.permute.xlu0 %2437
    %2439 = vrot.lane.b32.xlu0 %v2429, 64
    %v2440 = vpop.permute.xlu0 %2439
    %2441 = vrot.lane.b32.xlu0 %v2430, 64
    %v2442 = vpop.permute.xlu0 %2441
    %v2447 = vsel %vm720, %v1371, %v2436
    %v2448 = vsel %vm720, %v1372, %v2438
    %v2449 = vsel %vm720, %v1373, %v2440
    %v2450 = vsel %vm720, %v1374, %v2442
    %2452 = vset.pattern.permute.xlu0 0
    %2453 = vperm.xlu0 %2452, %v63
    %v2454 = vpop.permute.xlu0 %2453
    %2457 = vset.pattern.permute.xlu0 0
    %2458 = vperm.xlu0 %2457, %v64
    %v2459 = vpop.permute.xlu0 %2458
    %2462 = vset.pattern.permute.xlu0 0
    %2463 = vperm.xlu0 %2462, %v65
    %v2464 = vpop.permute.xlu0 %2463
    %2467 = vset.pattern.permute.xlu0 0
    %2468 = vperm.xlu0 %2467, %v66
    %v2469 = vpop.permute.xlu0 %2468
    %v2472 = vsel %vm241, %v31, 0
    %v2475 = vsel %vm241, %v32, 0
    %v2478 = vsel %vm241, %v33, 0
    %v2481 = vsel %vm241, %v34, 0
    %2483 = vmatpush.msra.mxu0 0.0
    %2484 = vmatpush.msra.mxu0 0.0
    %2485 = vmatpush.msra.mxu0 0.0
    %2486 = vmatpush.msra.mxu0 0.0
    %2487 = vmatpush.msra.mxu0 0.0
    %2488 = vmatpush.msra.mxu0 0.0
    %2489 = vmatpush.msra.mxu0 0.0
    %2490 = vmatpush.msra.mxu0 0.0
    %2491 = vmatpush.msra.mxu0 0.0
    %2492 = vmatpush.msra.mxu0 0.0
    %2493 = vmatpush.msra.mxu0 0.0
    %2494 = vmatpush.msra.mxu0 0.0
    %2495 = vmatpush.msra.mxu0 %v2450
    %2496 = vmatpush.msra.mxu0 %v2449
    %2497 = vmatpush.msra.mxu0 %v2448
    %2498 = vmatpush.msra.mxu0 %v2447
    %2499 = vmatmul.f32.gmra.mxu0 %v2472
    %v2500 = vpop.f32.mrf.mxu0
    %v2501 = vadd.f32 %v2454, %v2500
    %2502 = vmatmul.f32.gmra.mxu0 %v2475
    %v2503 = vpop.f32.mrf.mxu0
    %v2504 = vadd.f32 %v2459, %v2503
    %2505 = vmatmul.f32.gmra.mxu0 %v2478
    %v2506 = vpop.f32.mrf.mxu0
    %v2507 = vadd.f32 %v2464, %v2506
    %2508 = vmatmul.f32.gmra.mxu0 %v2481
    %v2509 = vpop.f32.mrf.mxu0
    %v2510 = vadd.f32 %v2469, %v2509
    %2511 = vdwg.mxu0
    %v2512 = vadd.f32 %v2501, %v15
    %v2513 = vadd.f32 %v2504, %v16
    %v2514 = vadd.f32 %v2507, %v17
    %v2515 = vadd.f32 %v2510, %v18
    %v2516 = vadd.f32 %v2512, %v2513
    %v2517 = vadd.f32 %v2516, %v2514
    %v2518 = vadd.f32 %v2517, %v2515
    %v2519 = vrot.slane %v2518, 4
    %v2520 = vadd.f32 %v2518, %v2519
    %v2521 = vrot.slane %v2520, 2
    %v2522 = vadd.f32 %v2520, %v2521
    %v2523 = vrot.slane %v2522, 1
    %v2524 = vadd.f32 %v2522, %v2523
    %v2525 = vmul.f32 %v2524, %v98
    %v2526 = vsub.f32 %v2512, %v2525
    %v2527 = vsub.f32 %v2513, %v2525
    %v2528 = vsub.f32 %v2514, %v2525
    %v2529 = vsub.f32 %v2515, %v2525
    %v2530 = vmul.f32 %v2526, %v2526
    %v2531 = vmul.f32 %v2527, %v2527
    %v2532 = vmul.f32 %v2528, %v2528
    %v2533 = vmul.f32 %v2529, %v2529
    %v2534 = vadd.f32 %v2530, %v2531
    %v2535 = vadd.f32 %v2534, %v2532
    %v2536 = vadd.f32 %v2535, %v2533
    %v2537 = vrot.slane %v2536, 4
    %v2538 = vadd.f32 %v2536, %v2537
    %v2539 = vrot.slane %v2538, 2
    %v2540 = vadd.f32 %v2538, %v2539
    %v2541 = vrot.slane %v2540, 1
    %v2542 = vadd.f32 %v2540, %v2541
    %v2543 = vmul.f32 %v2542, %v98
    %v2544 = vadd.f32 %v2543, 1e-05
    %v2545 = vrsqrt.pop %v2544
    %v2546 = vmul.f32 %v2545, %v2544
    %v2547 = vmul.f32 %v2546, %v2545
    %v2548 = vmul.f32 0.5, %v2547
    %v2549 = vsub.f32 1.5, %v2548
    %v2550 = vmul.f32 %v2545, %v2549
    %vm2551 = vweird.f32 %v2544
    %vm2552 = vweird.f32 %v2545
    %vm2553 = vmor %vm2551, %vm2552
    %v2554 = vsel %vm2553, %v2545, %v2550
    %v2555 = vmul.f32 %v2526, %v2554
    %v2556 = vmul.f32 %v2527, %v2554
    %v2557 = vmul.f32 %v2528, %v2554
    %v2558 = vmul.f32 %v2529, %v2554
    %2560 = vset.pattern.permute.xlu0 0
    %2561 = vperm.xlu0 %2560, %v67
    %v2562 = vpop.permute.xlu0 %2561
    %2565 = vset.pattern.permute.xlu0 0
    %2566 = vperm.xlu0 %2565, %v68
    %v2567 = vpop.permute.xlu0 %2566
    %2570 = vset.pattern.permute.xlu0 0
    %2571 = vperm.xlu0 %2570, %v69
    %v2572 = vpop.permute.xlu0 %2571
    %2575 = vset.pattern.permute.xlu0 0
    %2576 = vperm.xlu0 %2575, %v70
    %v2577 = vpop.permute.xlu0 %2576
    %v2579 = vmul.f32 %v2555, %v2562
    %v2580 = vmul.f32 %v2556, %v2567
    %v2581 = vmul.f32 %v2557, %v2572
    %v2582 = vmul.f32 %v2558, %v2577
    %2584 = vset.pattern.permute.xlu0 0
    %2585 = vperm.xlu0 %2584, %v71
    %v2586 = vpop.permute.xlu0 %2585
    %2589 = vset.pattern.permute.xlu0 0
    %2590 = vperm.xlu0 %2589, %v72
    %v2591 = vpop.permute.xlu0 %2590
    %2594 = vset.pattern.permute.xlu0 0
    %2595 = vperm.xlu0 %2594, %v73
    %v2596 = vpop.permute.xlu0 %2595
    %2599 = vset.pattern.permute.xlu0 0
    %2600 = vperm.xlu0 %2599, %v74
    %v2601 = vpop.permute.xlu0 %2600
    %v2603 = vadd.f32 %v2579, %v2586
    %v2604 = vadd.f32 %v2580, %v2591
    %v2605 = vadd.f32 %v2581, %v2596
    %v2606 = vadd.f32 %v2582, %v2601
    %2608 = vset.pattern.permute.xlu0 0
    %2609 = vperm.xlu0 %2608, %v75
    %v2610 = vpop.permute.xlu0 %2609
    %2613 = vset.pattern.permute.xlu0 0
    %2614 = vperm.xlu0 %2613, %v76
    %v2615 = vpop.permute.xlu0 %2614
    %2618 = vset.pattern.permute.xlu0 0
    %2619 = vperm.xlu0 %2618, %v77
    %v2620 = vpop.permute.xlu0 %2619
    %2623 = vset.pattern.permute.xlu0 0
    %2624 = vperm.xlu0 %2623, %v78
    %v2625 = vpop.permute.xlu0 %2624
    %v2628 = vsel %vm241, %v35, 0
    %v2631 = vsel %vm241, %v36, 0
    %v2634 = vsel %vm241, %v37, 0
    %v2637 = vsel %vm241, %v38, 0
    %2639 = vmatpush.msra.mxu0 0.0
    %2640 = vmatpush.msra.mxu0 0.0
    %2641 = vmatpush.msra.mxu0 0.0
    %2642 = vmatpush.msra.mxu0 0.0
    %2643 = vmatpush.msra.mxu0 0.0
    %2644 = vmatpush.msra.mxu0 0.0
    %2645 = vmatpush.msra.mxu0 0.0
    %2646 = vmatpush.msra.mxu0 0.0
    %2647 = vmatpush.msra.mxu0 0.0
    %2648 = vmatpush.msra.mxu0 0.0
    %2649 = vmatpush.msra.mxu0 0.0
    %2650 = vmatpush.msra.mxu0 0.0
    %2651 = vmatpush.msra.mxu0 %v2606
    %2652 = vmatpush.msra.mxu0 %v2605
    %2653 = vmatpush.msra.mxu0 %v2604
    %2654 = vmatpush.msra.mxu0 %v2603
    %2655 = vmatmul.f32.gmra.mxu0 %v2628
    %v2656 = vpop.f32.mrf.mxu0
    %v2657 = vadd.f32 %v2610, %v2656
    %2658 = vmatmul.f32.gmra.mxu0 %v2631
    %v2659 = vpop.f32.mrf.mxu0
    %v2660 = vadd.f32 %v2615, %v2659
    %2661 = vmatmul.f32.gmra.mxu0 %v2634
    %v2662 = vpop.f32.mrf.mxu0
    %v2663 = vadd.f32 %v2620, %v2662
    %2664 = vmatmul.f32.gmra.mxu0 %v2637
    %v2665 = vpop.f32.mrf.mxu0
    %v2666 = vadd.f32 %v2625, %v2665
    %2667 = vdwg.mxu0
    %v2668 = vmul.f32 %v2657, 0.5
    %v2669 = vmul.f32 %v2660, 0.5
    %v2670 = vmul.f32 %v2663, 0.5
    %v2671 = vmul.f32 %v2666, 0.5
    %v2672 = vmul.f32 %v2657, 0.70710677
    %v2673 = vmul.f32 %v2660, 0.70710677
    %v2674 = vmul.f32 %v2663, 0.70710677
    %v2675 = vmul.f32 %v2666, 0.70710677
    %v2676 = vmul.f32 %v2672, %v2672
    %v2677 = vmin.f32 16.0, %v2676
    %v2678 = vmul.f32 %v2677, 2.1237322e-06
    %v2679 = vadd.f32 %v2678, 0.00028619796
    %v2680 = vmul.f32 %v2677, %v2679
    %v2681 = vadd.f32 %v2680, 0.0036580483
    %v2682 = vmul.f32 %v2677, %v2681
    %v2683 = vadd.f32 %v2682, 0.05243302
    %v2684 = vmul.f32 %v2677, %v2683
    %v2685 = vadd.f32 %v2684, 0.18741608
    %v2686 = vmul.f32 %v2677, %v2685
    %v2687 = vadd.f32 %v2686, 1.1283791
    %v2688 = vmul.f32 %v2672, %v2687
    %v2689 = vmul.f32 %v2677, 3.8918573e-05
    %v2690 = vadd.f32 %v2689, 0.001143296
    %v2691 = vmul.f32 %v2677, %v2690
    %v2692 = vadd.f32 %v2691, 0.014752088
    %v2693 = vmul.f32 %v2677, %v2692
    %v2694 = vadd.f32 %v2693, 0.112945676
    %v2695 = vmul.f32 %v2677, %v2694
    %v2696 = vadd.f32 %v2695, 0.4994258
    %v2697 = vmul.f32 %v2677, %v2696
    %v2698 = vadd.f32 %v2697, 1.0
    %v2699 = vrcp.pop %v2698
    %v2700 = vmul.f32 %v2698, %v2699
    %v2701 = vsub.f32 1.0, %v2700
    %v2702 = vmul.f32 %v2699, %v2701
    %v2703 = vadd.f32 %v2699, %v2702
    %vm2704 = vweird.f32 %v2698
    %vm2705 = vweird.f32 %v2699
    %vm2706 = vmor %vm2704, %vm2705
    %v2707 = vsel %vm2706, %v2699, %v2703
    %v2708 = vand.u32 2147483647, %v2698
    %vm2709 = vcmp.eq.f32.partialorder %v2708, 8.507059e+37
    %v2710 = vand.u32 %v2698, 2147483648
    %v2711 = vor.u32 1.1754944e-38, %v2710
    %v2712 = vsel %vm2709, %v2711, %v2707
    %v2713 = vmul.f32 %v2688, %v2712
    %v2714 = vmin.f32 %v2713, 1.0
    %v2715 = vmax.f32 %v2714, -1.0
    %v2716 = vmul.f32 %v2673, %v2673
    %v2717 = vmin.f32 16.0, %v2716
    %v2718 = vmul.f32 %v2717, 2.1237322e-06
    %v2719 = vadd.f32 %v2718, 0.00028619796
    %v2720 = vmul.f32 %v2717, %v2719
    %v2721 = vadd.f32 %v2720, 0.0036580483
    %v2722 = vmul.f32 %v2717, %v2721
    %v2723 = vadd.f32 %v2722, 0.05243302
    %v2724 = vmul.f32 %v2717, %v2723
    %v2725 = vadd.f32 %v2724, 0.18741608
    %v2726 = vmul.f32 %v2717, %v2725
    %v2727 = vadd.f32 %v2726, 1.1283791
    %v2728 = vmul.f32 %v2673, %v2727
    %v2729 = vmul.f32 %v2717, 3.8918573e-05
    %v2730 = vadd.f32 %v2729, 0.001143296
    %v2731 = vmul.f32 %v2717, %v2730
    %v2732 = vadd.f32 %v2731, 0.014752088
    %v2733 = vmul.f32 %v2717, %v2732
    %v2734 = vadd.f32 %v2733, 0.112945676
    %v2735 = vmul.f32 %v2717, %v2734
    %v2736 = vadd.f32 %v2735, 0.4994258
    %v2737 = vmul.f32 %v2717, %v2736
    %v2738 = vadd.f32 %v2737, 1.0
    %v2739 = vrcp.pop %v2738
    %v2740 = vmul.f32 %v2738, %v2739
    %v2741 = vsub.f32 1.0, %v2740
    %v2742 = vmul.f32 %v2739, %v2741
    %v2743 = vadd.f32 %v2739, %v2742
    %vm2744 = vweird.f32 %v2738
    %vm2745 = vweird.f32 %v2739
    %vm2746 = vmor %vm2744, %vm2745
    %v2747 = vsel %vm2746, %v2739, %v2743
    %v2748 = vand.u32 2147483647, %v2738
    %vm2749 = vcmp.eq.f32.partialorder %v2748, 8.507059e+37
    %v2750 = vand.u32 %v2738, 2147483648
    %v2751 = vor.u32 1.1754944e-38, %v2750
    %v2752 = vsel %vm2749, %v2751, %v2747
    %v2753 = vmul.f32 %v2728, %v2752
    %v2754 = vmin.f32 %v2753, 1.0
    %v2755 = vmax.f32 %v2754, -1.0
    %v2756 = vmul.f32 %v2674, %v2674
    %v2757 = vmin.f32 16.0, %v2756
    %v2758 = vmul.f32 %v2757, 2.1237322e-06
    %v2759 = vadd.f32 %v2758, 0.00028619796
    %v2760 = vmul.f32 %v2757, %v2759
    %v2761 = vadd.f32 %v2760, 0.0036580483
    %v2762 = vmul.f32 %v2757, %v2761
    %v2763 = vadd.f32 %v2762, 0.05243302
    %v2764 = vmul.f32 %v2757, %v2763
    %v2765 = vadd.f32 %v2764, 0.18741608
    %v2766 = vmul.f32 %v2757, %v2765
    %v2767 = vadd.f32 %v2766, 1.1283791
    %v2768 = vmul.f32 %v2674, %v2767
    %v2769 = vmul.f32 %v2757, 3.8918573e-05
    %v2770 = vadd.f32 %v2769, 0.001143296
    %v2771 = vmul.f32 %v2757, %v2770
    %v2772 = vadd.f32 %v2771, 0.014752088
    %v2773 = vmul.f32 %v2757, %v2772
    %v2774 = vadd.f32 %v2773, 0.112945676
    %v2775 = vmul.f32 %v2757, %v2774
    %v2776 = vadd.f32 %v2775, 0.4994258
    %v2777 = vmul.f32 %v2757, %v2776
    %v2778 = vadd.f32 %v2777, 1.0
    %v2779 = vrcp.pop %v2778
    %v2780 = vmul.f32 %v2778, %v2779
    %v2781 = vsub.f32 1.0, %v2780
    %v2782 = vmul.f32 %v2779, %v2781
    %v2783 = vadd.f32 %v2779, %v2782
    %vm2784 = vweird.f32 %v2778
    %vm2785 = vweird.f32 %v2779
    %vm2786 = vmor %vm2784, %vm2785
    %v2787 = vsel %vm2786, %v2779, %v2783
    %v2788 = vand.u32 2147483647, %v2778
    %vm2789 = vcmp.eq.f32.partialorder %v2788, 8.507059e+37
    %v2790 = vand.u32 %v2778, 2147483648
    %v2791 = vor.u32 1.1754944e-38, %v2790
    %v2792 = vsel %vm2789, %v2791, %v2787
    %v2793 = vmul.f32 %v2768, %v2792
    %v2794 = vmin.f32 %v2793, 1.0
    %v2795 = vmax.f32 %v2794, -1.0
    %v2796 = vmul.f32 %v2675, %v2675
    %v2797 = vmin.f32 16.0, %v2796
    %v2798 = vmul.f32 %v2797, 2.1237322e-06
    %v2799 = vadd.f32 %v2798, 0.00028619796
    %v2800 = vmul.f32 %v2797, %v2799
    %v2801 = vadd.f32 %v2800, 0.0036580483
    %v2802 = vmul.f32 %v2797, %v2801
    %v2803 = vadd.f32 %v2802, 0.05243302
    %v2804 = vmul.f32 %v2797, %v2803
    %v2805 = vadd.f32 %v2804, 0.18741608
    %v2806 = vmul.f32 %v2797, %v2805
    %v2807 = vadd.f32 %v2806, 1.1283791
    %v2808 = vmul.f32 %v2675, %v2807
    %v2809 = vmul.f32 %v2797, 3.8918573e-05
    %v2810 = vadd.f32 %v2809, 0.001143296
    %v2811 = vmul.f32 %v2797, %v2810
    %v2812 = vadd.f32 %v2811, 0.014752088
    %v2813 = vmul.f32 %v2797, %v2812
    %v2814 = vadd.f32 %v2813, 0.112945676
    %v2815 = vmul.f32 %v2797, %v2814
    %v2816 = vadd.f32 %v2815, 0.4994258
    %v2817 = vmul.f32 %v2797, %v2816
    %v2818 = vadd.f32 %v2817, 1.0
    %v2819 = vrcp.pop %v2818
    %v2820 = vmul.f32 %v2818, %v2819
    %v2821 = vsub.f32 1.0, %v2820
    %v2822 = vmul.f32 %v2819, %v2821
    %v2823 = vadd.f32 %v2819, %v2822
    %vm2824 = vweird.f32 %v2818
    %vm2825 = vweird.f32 %v2819
    %vm2826 = vmor %vm2824, %vm2825
    %v2827 = vsel %vm2826, %v2819, %v2823
    %v2828 = vand.u32 2147483647, %v2818
    %vm2829 = vcmp.eq.f32.partialorder %v2828, 8.507059e+37
    %v2830 = vand.u32 %v2818, 2147483648
    %v2831 = vor.u32 1.1754944e-38, %v2830
    %v2832 = vsel %vm2829, %v2831, %v2827
    %v2833 = vmul.f32 %v2808, %v2832
    %v2834 = vmin.f32 %v2833, 1.0
    %v2835 = vmax.f32 %v2834, -1.0
    %v2836 = vadd.f32 %v2715, 1.0
    %v2837 = vadd.f32 %v2755, 1.0
    %v2838 = vadd.f32 %v2795, 1.0
    %v2839 = vadd.f32 %v2835, 1.0
    %v2840 = vmul.f32 %v2668, %v2836
    %v2841 = vmul.f32 %v2669, %v2837
    %v2842 = vmul.f32 %v2670, %v2838
    %v2843 = vmul.f32 %v2671, %v2839
    %2845 = vset.pattern.permute.xlu0 0
    %2846 = vperm.xlu0 %2845, %v79
    %v2847 = vpop.permute.xlu0 %2846
    %2850 = vset.pattern.permute.xlu0 0
    %2851 = vperm.xlu0 %2850, %v80
    %v2852 = vpop.permute.xlu0 %2851
    %2855 = vset.pattern.permute.xlu0 0
    %2856 = vperm.xlu0 %2855, %v81
    %v2857 = vpop.permute.xlu0 %2856
    %2860 = vset.pattern.permute.xlu0 0
    %2861 = vperm.xlu0 %2860, %v82
    %v2862 = vpop.permute.xlu0 %2861
    %v2865 = vsel %vm241, %v39, 0
    %v2868 = vsel %vm241, %v40, 0
    %v2871 = vsel %vm241, %v41, 0
    %v2874 = vsel %vm241, %v42, 0
    %2876 = vmatpush.msra.mxu0 0.0
    %2877 = vmatpush.msra.mxu0 0.0
    %2878 = vmatpush.msra.mxu0 0.0
    %2879 = vmatpush.msra.mxu0 0.0
    %2880 = vmatpush.msra.mxu0 0.0
    %2881 = vmatpush.msra.mxu0 0.0
    %2882 = vmatpush.msra.mxu0 0.0
    %2883 = vmatpush.msra.mxu0 0.0
    %2884 = vmatpush.msra.mxu0 0.0
    %2885 = vmatpush.msra.mxu0 0.0
    %2886 = vmatpush.msra.mxu0 0.0
    %2887 = vmatpush.msra.mxu0 0.0
    %2888 = vmatpush.msra.mxu0 %v2843
    %2889 = vmatpush.msra.mxu0 %v2842
    %2890 = vmatpush.msra.mxu0 %v2841
    %2891 = vmatpush.msra.mxu0 %v2840
    %2892 = vmatmul.f32.gmra.mxu0 %v2865
    %v2893 = vpop.f32.mrf.mxu0
    %v2894 = vadd.f32 %v2847, %v2893
    %2895 = vmatmul.f32.gmra.mxu0 %v2868
    %v2896 = vpop.f32.mrf.mxu0
    %v2897 = vadd.f32 %v2852, %v2896
    %2898 = vmatmul.f32.gmra.mxu0 %v2871
    %v2899 = vpop.f32.mrf.mxu0
    %v2900 = vadd.f32 %v2857, %v2899
    %2901 = vmatmul.f32.gmra.mxu0 %v2874
    %v2902 = vpop.f32.mrf.mxu0
    %v2903 = vadd.f32 %v2862, %v2902
    %2904 = vdwg.mxu0
    %v2905 = vadd.f32 %v2894, %v2512
    %v2906 = vadd.f32 %v2897, %v2513
    %v2907 = vadd.f32 %v2900, %v2514
    %v2908 = vadd.f32 %v2903, %v2515
    %2909 = vst [vmem:[#allocation2] sm:$0xff] %v2905
    %2910 = vst [vmem:[#allocation2 + $0x8] sm:$0xff] %v2906
    %2911 = vst [vmem:[#allocation2 + $0x10] sm:$0xff] %v2907
    %2912 = vst [vmem:[#allocation2 + $0x18] sm:$0xff] %v2908
    // Predicated region
    $region14: #{tpu_custom_call.1} parent=1 // pred_check
      _
    $region15: #{tpu_custom_call.1} parent=1 // pred_check_branch
      %2914 = sbr.rel (0) target = $region17
    $region16: #{tpu_custom_call.1} parent=1 // pred_region
      %2916 = vsyncadd [#allocation3], 0
      %s2917 = sshll.u32 [#allocation2], 4
      %s2918 = int_to_ptr.vmem [resolvable:$true] %s2917
      %s2919 = sshll.u32 %s3, 4
      %s2920 = int_to_ptr.hbm [resolvable:$true] %s2919
      %2925 = dma.vmem_to_hbm [thread:$0]  %s2918, 512, %s2920, [#allocation3], 128, 128, 8
    $region17: #{tpu_custom_call.1} parent=1 // pred_fallthru
      _
    // Predicated region
    $region18: #{tpu_custom_call.1} parent=1 // pred_check
      _
    $region19: #{tpu_custom_call.1} parent=1 // pred_check_branch
      %2927 = sbr.rel (0) target = $region21
    $region20: #{tpu_custom_call.1} parent=1 // pred_region
      %2929 = dma.done [#allocation3], 512
    $region21: #{tpu_custom_call.1} parent=1 // pred_fallthru
      _
    %2930 = vsyncpa [#allocation3], 1

</llo_original>
